<compile_context>
chip_gen: v6e
topology: v6e:2x2x1
jax: 0.10.0
libtpu: 0.0.40
codegen_flags: <defaults>
</compile_context>

<pallas_src>
import numpy as np
import jax
import jax.numpy as jnp
from jax import lax
from jax.experimental import pallas as pl
from jax.experimental.pallas import tpu as pltpu


def _prelu(x, a):
    # nn.PReLU with a single learnable slope `a`
    return jnp.where(x >= 0, x, a * x)


def _make_kernel(H, W, TH, Cin, P, Cout, cdt):
    Wp = W + 2                     # padded width
    Ns = (TH + 2) * Wp             # spatial extent of the halo'd window
    N = TH * W                     # spatial extent of the output tile

    def kernel(x_ref, w1_ref, b1_ref, w2_ref, b2_ref, w3r_ref, b3r_ref,
               sl_ref, out_ref):
        r = pl.program_id(1)
        row0 = pl.multiple_of(r * TH, TH)          # aligned sublane offset
        a1, a2, a3 = sl_ref[0], sl_ref[1], sl_ref[2]

        # (Cin, TH+2, W+2) window of the zero-padded input (1-row/col halo).
        xw = x_ref[0, :, pl.ds(row0, TH + 2), :]

        # ---- conv1: 1x1 conv == channel matmul (lanes = spatial) + PReLU ----
        h1 = jnp.dot(w1_ref[...], xw.reshape(Cin, Ns).astype(cdt),
                     preferred_element_type=jnp.float32)
        h1 = _prelu(h1 + b1_ref[...], a1)
        h1 = h1.reshape(P, TH + 2, Wp)

        # Re-zero the padded ring: conv2 (pad=1) must see zeros there, not
        # PReLU(b1).  Interior halo rows keep their genuine conv1 values.
        gy = row0 + lax.broadcasted_iota(jnp.int32, (1, TH + 2, Wp), 1)
        gx = lax.broadcasted_iota(jnp.int32, (1, TH + 2, Wp), 2)
        valid = (gy >= 1) & (gy <= H) & (gx >= 1) & (gx <= W)
        h1 = jnp.where(valid, h1, 0.0).astype(cdt)

        # ---- conv2: 3x3, pad=1, as ONE im2col matmul (K = 9*P) + PReLU ----
        cols = [h1[:, ky:ky + TH, kx:kx + W]
                for ky in range(3) for kx in range(3)]
        patch = jnp.concatenate(cols, axis=0).reshape(9 * P, N)
        h2 = jnp.dot(w2_ref[...], patch, preferred_element_type=jnp.float32)
        h2 = _prelu(h2 + b2_ref[...], a2)

        # ---- conv3 (1x1) fused with scale_residual (1x1): one matmul ----
        xc = xw[:, 1:TH + 1, 1:W + 1].reshape(Cin, N)
        z = jnp.concatenate([h2.astype(cdt), xc.astype(cdt)], axis=0)
        out = jnp.dot(w3r_ref[...], z, preferred_element_type=jnp.float32)
        out = _prelu(out + b3r_ref[...], a3)
        out_ref[0] = out.astype(out_ref.dtype)     # lane-dense (Cout, TH*W)

    return kernel


def res_block_fpn(x_nchw, params, *, stride=1, block_h=8,
                  compute_dtype=jnp.bfloat16):
    """Pallas ResBlockFPN forward.  x_nchw: (B, start_filts, H, W) float32."""
    (w1, b1, w2, b2, w3, b3, wr, br, slopes) = params
    if stride != 1:
        # ks=1 convs with stride == spatial subsampling + stride-1 1x1 convs.
        x_nchw = x_nchw[:, :, ::stride, ::stride]
    B, Cin, H, W = x_nchw.shape
    P = w1.shape[0]
    Cout = w3.shape[0]

    TH = block_h
    if H % TH != 0 or (TH * W) % 128 != 0:
        TH = H                     # fall back to one row tile per batch elem

    # 1-pixel zero halo for conv2's pad=1 (smallest tensor in the block).
    x_pad = jnp.pad(x_nchw, ((0, 0), (0, 0), (1, 1), (1, 1)))

    # Matmul-form (channels-first) weights; conv3 + scale_residual fused.
    w1m = w1.reshape(P, Cin).astype(compute_dtype)
    w2m = jnp.transpose(w2, (0, 2, 3, 1)).reshape(P, 9 * P).astype(compute_dtype)
    w3m = w3.reshape(Cout, P)
    if wr is None:                 # identity skip (start_filts == end_filts)
        wrm = jnp.eye(Cout, Cin, dtype=jnp.float32)
        brv = jnp.zeros((Cout,), jnp.float32)
    else:
        wrm = wr.reshape(Cout, Cin)
        brv = br
    w3rm = jnp.concatenate([w3m, wrm], axis=1).astype(compute_dtype)
    b1c = b1.reshape(P, 1).astype(jnp.float32)
    b2c = b2.reshape(P, 1).astype(jnp.float32)
    b3rc = (b3 + brv).reshape(Cout, 1).astype(jnp.float32)

    kernel = _make_kernel(H, W, TH, Cin, P, Cout, compute_dtype)

    def wspec(shape):
        return pl.BlockSpec(shape, lambda b, r: (0,) * len(shape))

    out_flat = pl.pallas_call(
        kernel,
        out_shape=jax.ShapeDtypeStruct((B, Cout, H * W), jnp.float32),
        grid=(B, H // TH),
        in_specs=[
            # Full padded input per batch element; each row tile slices its
            # (TH+2)-row halo window in-kernel.  The block index is constant
            # across the row axis, so it is DMA'd once per batch element.
            pl.BlockSpec((1, Cin, H + 2, W + 2), lambda b, r: (b, 0, 0, 0)),
            wspec((P, Cin)),            # w1  (1x1 conv as matmul)
            wspec((P, 1)),              # b1
            wspec((P, 9 * P)),          # w2  (im2col form)
            wspec((P, 1)),              # b2
            wspec((Cout, P + Cin)),     # [w3 | w_residual] fused
            wspec((Cout, 1)),           # b3 + b_residual
            pl.BlockSpec(memory_space=pltpu.MemorySpace.SMEM),  # PReLU slopes
        ],
        out_specs=pl.BlockSpec((1, Cout, TH * W), lambda b, r: (b, 0, r)),
        compiler_params=pltpu.CompilerParams(
            dimension_semantics=("parallel", "parallel"),
            vmem_limit_bytes=32 * 1024 * 1024),
    )(x_pad, w1m, b1c, w2m, b2c, w3rm, b3rc, slopes)

    return out_flat.reshape(B, Cout, H, W)


def ref_forward(x, params, *, stride=1):
    """Pure-JAX (XLA conv, full f32) NCHW reference mirroring PyTorch forward."""
    (w1, b1, w2, b2, w3, b3, wr, br, slopes) = params
    dn = ('NCHW', 'OIHW', 'NCHW')

    def conv(h, w, b, s, pad):
        y = lax.conv_general_dilated(h, w, (s, s), pad, dimension_numbers=dn,
                                     precision=lax.Precision.HIGHEST)
        return y + b.reshape(1, -1, 1, 1)

    h = _prelu(conv(x, w1, b1, stride, 'VALID'), slopes[0])
    h = _prelu(conv(h, w2, b2, 1, [(1, 1), (1, 1)]), slopes[1])
    h = conv(h, w3, b3, 1, 'VALID')
    res = conv(x, wr, br, stride, 'VALID') if wr is not None else x
    return _prelu(h + res, slopes[2])


if __name__ == "__main__":
    B, H, W = 2, 16, 16
    start_filts, planes, end_filts = 4, 8, 16
    stride = 1   # start_filts != end_filts -> scale_residual (1x1 conv) active

    key = jax.random.PRNGKey(0)
    ks = jax.random.split(key, 9)
    # PyTorch-layout parameters: conv weights (O, I, kh, kw), biases (O,)
    w1 = jax.random.normal(ks[0], (planes, start_filts, 1, 1), jnp.float32) / np.sqrt(start_filts)
    b1 = 0.1 * jax.random.normal(ks[1], (planes,), jnp.float32)
    w2 = jax.random.normal(ks[2], (planes, planes, 3, 3), jnp.float32) / np.sqrt(9 * planes)
    b2 = 0.1 * jax.random.normal(ks[3], (planes,), jnp.float32)
    w3 = jax.random.normal(ks[4], (end_filts, planes, 1, 1), jnp.float32) / np.sqrt(planes)
    b3 = 0.1 * jax.random.normal(ks[5], (end_filts,), jnp.float32)
    wr = jax.random.normal(ks[6], (end_filts, start_filts, 1, 1), jnp.float32) / np.sqrt(start_filts)
    br = 0.1 * jax.random.normal(ks[7], (end_filts,), jnp.float32)
    slopes = jnp.full((3,), 0.25, jnp.float32)   # nn.PReLU() default init
    params = (w1, b1, w2, b2, w3, b3, wr, br, slopes)

    # input is NCHW, like the PyTorch module expects
    x = jax.random.normal(ks[8], (B, start_filts, H, W), jnp.float32)

    ref = ref_forward(x, params, stride=stride)

    # f32-matmul path: tight numerical check against the XLA f32 reference.
    out_f32 = jax.block_until_ready(
        res_block_fpn(x, params, stride=stride, compute_dtype=jnp.float32))
    assert out_f32.shape == (B, end_filts, H, W), out_f32.shape
    err32 = float(jnp.max(jnp.abs(out_f32 - ref)))
    assert jnp.allclose(out_f32, ref, atol=1e-3, rtol=1e-3), f"f32 max err {err32}"

    # bf16-matmul path (default, f32 accumulation): looser check.
    out_bf = jax.block_until_ready(res_block_fpn(x, params, stride=stride))
    assert out_bf.shape == (B, end_filts, H, W), out_bf.shape
    errbf = float(jnp.max(jnp.abs(out_bf - ref)))
    assert jnp.allclose(out_bf, ref, atol=5e-2, rtol=5e-2), f"bf16 max err {errbf}"

    print("KERNEL_OK")
</pallas_src>

<mosaic_0001>
module attributes {stable_mosaic.version = 11 : i64} {
  func.func @kernel(%arg0: i32, %arg1: i32, %arg2: memref<1x4x18x18xf32, #tpu.memory_space<vmem>>, %arg3: memref<8x4xf32, #tpu.memory_space<vmem>>, %arg4: memref<8x1xf32, #tpu.memory_space<vmem>>, %arg5: memref<8x72xf32, #tpu.memory_space<vmem>>, %arg6: memref<8x1xf32, #tpu.memory_space<vmem>>, %arg7: memref<16x12xf32, #tpu.memory_space<vmem>>, %arg8: memref<16x1xf32, #tpu.memory_space<vmem>>, %arg9: memref<3xf32, #tpu.memory_space<smem>>, %arg10: memref<1x16x128xf32, #tpu.memory_space<vmem>>) attributes {dimension_semantics = [#tpu.dimension_semantics<parallel>, #tpu.dimension_semantics<parallel>], iteration_bounds = array<i64: 2, 2>, scalar_prefetch = 0 : i64, scratch_operands = 0 : i64, tpu.core_type = #tpu.core_type<tc>, window_params = [{transform_indices = @transform_0, window_bounds = array<i64: 1, 4, 18, 18>}, {pipeline_mode = #tpu.pipeline_mode<synchronous>, transform_indices = @transform_1, window_bounds = array<i64: 8, 4>}, {pipeline_mode = #tpu.pipeline_mode<synchronous>, transform_indices = @transform_2, window_bounds = array<i64: 8, 1>}, {pipeline_mode = #tpu.pipeline_mode<synchronous>, transform_indices = @transform_3, window_bounds = array<i64: 8, 72>}, {pipeline_mode = #tpu.pipeline_mode<synchronous>, transform_indices = @transform_4, window_bounds = array<i64: 8, 1>}, {pipeline_mode = #tpu.pipeline_mode<synchronous>, transform_indices = @transform_5, window_bounds = array<i64: 16, 12>}, {pipeline_mode = #tpu.pipeline_mode<synchronous>, transform_indices = @transform_6, window_bounds = array<i64: 16, 1>}, {transform_indices = @transform_7, window_bounds = array<i64: 3>}, {transform_indices = @transform_8, window_bounds = array<i64: 1, 16, 128>}]} {
    %c8_i32 = arith.constant 8 : i32
    %0 = arith.muli %arg1, %c8_i32 : i32
    %1 = tpu.assume_multiple %0, 8 : i32
    %c0 = arith.constant 0 : index
    %2 = memref.load %arg9[%c0] : memref<3xf32, #tpu.memory_space<smem>>
    %c1 = arith.constant 1 : index
    %3 = memref.load %arg9[%c1] : memref<3xf32, #tpu.memory_space<smem>>
    %c2 = arith.constant 2 : index
    %4 = memref.load %arg9[%c2] : memref<3xf32, #tpu.memory_space<smem>>
    %c0_0 = arith.constant 0 : index
    %c0_1 = arith.constant 0 : index
    %5 = arith.index_cast %1 : i32 to index
    %c0_2 = arith.constant 0 : index
    %6 = vector.load %arg2[%c0_0, %c0_1, %5, %c0_2] : memref<1x4x18x18xf32, #tpu.memory_space<vmem>>, vector<1x4x10x18xf32>
    %7 = vector.shape_cast %6 : vector<1x4x10x18xf32> to vector<4x10x18xf32>
    %c0_3 = arith.constant 0 : index
    %c0_4 = arith.constant 0 : index
    %8 = vector.load %arg3[%c0_3, %c0_4] : memref<8x4xf32, #tpu.memory_space<vmem>>, vector<8x4xf32>
    %9 = vector.shape_cast %7 : vector<4x10x18xf32> to vector<4x180xf32>
    %cst = arith.constant dense<0.000000e+00> : vector<8x180xf32>
    %10 = tpu.matmul %8, %9, %cst {dimension_numbers = #tpu.dot_dimension_numbers<[1], [0], [0], [1], [0, 0, 1, 1], [], []>} : vector<8x4xf32>, vector<4x180xf32>, vector<8x180xf32> -> vector<8x180xf32>
    %c0_5 = arith.constant 0 : index
    %c0_6 = arith.constant 0 : index
    %11 = vector.load %arg4[%c0_5, %c0_6] : memref<8x1xf32, #tpu.memory_space<vmem>>, vector<8x1xf32>
    %12 = vector.broadcast %11 : vector<8x1xf32> to vector<8x180xf32>
    %13 = arith.addf %10, %12 : vector<8x180xf32>
    %cst_7 = arith.constant 0.000000e+00 : f32
    %14 = vector.broadcast %cst_7 : f32 to vector<8x180xf32>
    %15 = arith.cmpf oge, %13, %14 : vector<8x180xf32>
    %16 = vector.broadcast %2 : f32 to vector<8x180xf32>
    %17 = arith.mulf %16, %13 : vector<8x180xf32>
    %18 = arith.select %15, %13, %17 : vector<8x180xi1>, vector<8x180xf32>
    %19 = vector.shape_cast %18 : vector<8x180xf32> to vector<8x10x18xf32>
    %20 = tpu.iota {dimensions = array<i32: 1>} : vector<1x10x18xi32>
    %21 = vector.broadcast %1 : i32 to vector<1x10x18xi32>
    %22 = arith.addi %21, %20 : vector<1x10x18xi32>
    %23 = tpu.iota {dimensions = array<i32: 2>} : vector<1x10x18xi32>
    %c1_i32 = arith.constant 1 : i32
    %24 = vector.broadcast %c1_i32 : i32 to vector<1x10x18xi32>
    %25 = arith.cmpi sge, %22, %24 : vector<1x10x18xi32>
    %c16_i32 = arith.constant 16 : i32
    %26 = vector.broadcast %c16_i32 : i32 to vector<1x10x18xi32>
    %27 = arith.cmpi sle, %22, %26 : vector<1x10x18xi32>
    %28 = arith.andi %25, %27 : vector<1x10x18xi1>
    %c1_i32_8 = arith.constant 1 : i32
    %29 = vector.broadcast %c1_i32_8 : i32 to vector<1x10x18xi32>
    %30 = arith.cmpi sge, %23, %29 : vector<1x10x18xi32>
    %31 = arith.andi %28, %30 : vector<1x10x18xi1>
    %c16_i32_9 = arith.constant 16 : i32
    %32 = vector.broadcast %c16_i32_9 : i32 to vector<1x10x18xi32>
    %33 = arith.cmpi sle, %23, %32 : vector<1x10x18xi32>
    %34 = arith.andi %31, %33 : vector<1x10x18xi1>
    %cst_10 = arith.constant 0.000000e+00 : f32
    %35 = vector.shape_cast %34 : vector<1x10x18xi1> to vector<1x10x18xi1>
    %36 = vector.broadcast %35 : vector<1x10x18xi1> to vector<8x10x18xi1>
    %37 = vector.broadcast %cst_10 : f32 to vector<8x10x18xf32>
    %38 = arith.select %36, %19, %37 : vector<8x10x18xi1>, vector<8x10x18xf32>
    %39 = vector.extract_strided_slice %38 {offsets = [0, 0, 0], sizes = [8, 8, 16], strides = [1, 1, 1]} : vector<8x10x18xf32> to vector<8x8x16xf32>
    %40 = vector.extract_strided_slice %38 {offsets = [0, 0, 1], sizes = [8, 8, 16], strides = [1, 1, 1]} : vector<8x10x18xf32> to vector<8x8x16xf32>
    %41 = vector.extract_strided_slice %38 {offsets = [0, 0, 2], sizes = [8, 8, 16], strides = [1, 1, 1]} : vector<8x10x18xf32> to vector<8x8x16xf32>
    %42 = vector.extract_strided_slice %38 {offsets = [0, 1, 0], sizes = [8, 8, 16], strides = [1, 1, 1]} : vector<8x10x18xf32> to vector<8x8x16xf32>
    %43 = vector.extract_strided_slice %38 {offsets = [0, 1, 1], sizes = [8, 8, 16], strides = [1, 1, 1]} : vector<8x10x18xf32> to vector<8x8x16xf32>
    %44 = vector.extract_strided_slice %38 {offsets = [0, 1, 2], sizes = [8, 8, 16], strides = [1, 1, 1]} : vector<8x10x18xf32> to vector<8x8x16xf32>
    %45 = vector.extract_strided_slice %38 {offsets = [0, 2, 0], sizes = [8, 8, 16], strides = [1, 1, 1]} : vector<8x10x18xf32> to vector<8x8x16xf32>
    %46 = vector.extract_strided_slice %38 {offsets = [0, 2, 1], sizes = [8, 8, 16], strides = [1, 1, 1]} : vector<8x10x18xf32> to vector<8x8x16xf32>
    %47 = vector.extract_strided_slice %38 {offsets = [0, 2, 2], sizes = [8, 8, 16], strides = [1, 1, 1]} : vector<8x10x18xf32> to vector<8x8x16xf32>
    %48 = tpu.concatenate %39, %40, %41, %42, %43, %44, %45, %46, %47 in 0 : vector<8x8x16xf32>, vector<8x8x16xf32>, vector<8x8x16xf32>, vector<8x8x16xf32>, vector<8x8x16xf32>, vector<8x8x16xf32>, vector<8x8x16xf32>, vector<8x8x16xf32>, vector<8x8x16xf32> -> vector<72x8x16xf32>
    %49 = vector.shape_cast %48 : vector<72x8x16xf32> to vector<72x128xf32>
    %c0_11 = arith.constant 0 : index
    %c0_12 = arith.constant 0 : index
    %50 = vector.load %arg5[%c0_11, %c0_12] : memref<8x72xf32, #tpu.memory_space<vmem>>, vector<8x72xf32>
    %cst_13 = arith.constant dense<0.000000e+00> : vector<8x128xf32>
    %51 = tpu.matmul %50, %49, %cst_13 {dimension_numbers = #tpu.dot_dimension_numbers<[1], [0], [0], [1], [0, 0, 1, 1], [], []>} : vector<8x72xf32>, vector<72x128xf32>, vector<8x128xf32> -> vector<8x128xf32>
    %c0_14 = arith.constant 0 : index
    %c0_15 = arith.constant 0 : index
    %52 = vector.load %arg6[%c0_14, %c0_15] : memref<8x1xf32, #tpu.memory_space<vmem>>, vector<8x1xf32>
    %53 = vector.broadcast %52 : vector<8x1xf32> to vector<8x128xf32>
    %54 = arith.addf %51, %53 : vector<8x128xf32>
    %cst_16 = arith.constant 0.000000e+00 : f32
    %55 = vector.broadcast %cst_16 : f32 to vector<8x128xf32>
    %56 = arith.cmpf oge, %54, %55 : vector<8x128xf32>
    %57 = vector.broadcast %3 : f32 to vector<8x128xf32>
    %58 = arith.mulf %57, %54 : vector<8x128xf32>
    %59 = arith.select %56, %54, %58 : vector<8x128xi1>, vector<8x128xf32>
    %60 = vector.extract_strided_slice %7 {offsets = [0, 1, 1], sizes = [4, 8, 16], strides = [1, 1, 1]} : vector<4x10x18xf32> to vector<4x8x16xf32>
    %61 = vector.shape_cast %60 : vector<4x8x16xf32> to vector<4x128xf32>
    %62 = tpu.concatenate %59, %61 in 0 : vector<8x128xf32>, vector<4x128xf32> -> vector<12x128xf32>
    %c0_17 = arith.constant 0 : index
    %c0_18 = arith.constant 0 : index
    %63 = vector.load %arg7[%c0_17, %c0_18] : memref<16x12xf32, #tpu.memory_space<vmem>>, vector<16x12xf32>
    %cst_19 = arith.constant dense<0.000000e+00> : vector<16x128xf32>
    %64 = tpu.matmul %63, %62, %cst_19 {dimension_numbers = #tpu.dot_dimension_numbers<[1], [0], [0], [1], [0, 0, 1, 1], [], []>} : vector<16x12xf32>, vector<12x128xf32>, vector<16x128xf32> -> vector<16x128xf32>
    %c0_20 = arith.constant 0 : index
    %c0_21 = arith.constant 0 : index
    %65 = vector.load %arg8[%c0_20, %c0_21] : memref<16x1xf32, #tpu.memory_space<vmem>>, vector<16x1xf32>
    %66 = vector.broadcast %65 : vector<16x1xf32> to vector<16x128xf32>
    %67 = arith.addf %64, %66 : vector<16x128xf32>
    %cst_22 = arith.constant 0.000000e+00 : f32
    %68 = vector.broadcast %cst_22 : f32 to vector<16x128xf32>
    %69 = arith.cmpf oge, %67, %68 : vector<16x128xf32>
    %70 = vector.broadcast %4 : f32 to vector<16x128xf32>
    %71 = arith.mulf %70, %67 : vector<16x128xf32>
    %72 = arith.select %69, %67, %71 : vector<16x128xi1>, vector<16x128xf32>
    %c0_23 = arith.constant 0 : index
    %c0_24 = arith.constant 0 : index
    %c0_25 = arith.constant 0 : index
    %73 = vector.load %arg10[%c0_23, %c0_24, %c0_25] : memref<1x16x128xf32, #tpu.memory_space<vmem>>, vector<1x16x128xf32>
    %74 = vector.shape_cast %73 : vector<1x16x128xf32> to vector<16x128xf32>
    %75 = vector.shape_cast %72 : vector<16x128xf32> to vector<1x16x128xf32>
    tpu.vector_store %arg10[%c0_23, %c0_24, %c0_25], %75 {strides = array<i32>} : memref<1x16x128xf32, #tpu.memory_space<vmem>>, vector<1x16x128xf32>,
    return
  }
  func.func @transform_0(%arg0: i32, %arg1: i32) -> (i32, i32, i32, i32) {
    %c0_i32 = arith.constant 0 : i32
    %c0_i32_0 = arith.constant 0 : i32
    %c0_i32_1 = arith.constant 0 : i32
    %c0_i32_2 = arith.constant 0 : i32
    return %arg0, %c0_i32, %c0_i32_0, %c0_i32_1 : i32, i32, i32, i32
  }
  func.func @transform_1(%arg0: i32, %arg1: i32) -> (i32, i32) {
    %c0_i32 = arith.constant 0 : i32
    %c0_i32_0 = arith.constant 0 : i32
    %c0_i32_1 = arith.constant 0 : i32
    return %c0_i32, %c0_i32_0 : i32, i32
  }
  func.func @transform_2(%arg0: i32, %arg1: i32) -> (i32, i32) {
    %c0_i32 = arith.constant 0 : i32
    %c0_i32_0 = arith.constant 0 : i32
    %c0_i32_1 = arith.constant 0 : i32
    return %c0_i32, %c0_i32_0 : i32, i32
  }
  func.func @transform_3(%arg0: i32, %arg1: i32) -> (i32, i32) {
    %c0_i32 = arith.constant 0 : i32
    %c0_i32_0 = arith.constant 0 : i32
    %c0_i32_1 = arith.constant 0 : i32
    return %c0_i32, %c0_i32_0 : i32, i32
  }
  func.func @transform_4(%arg0: i32, %arg1: i32) -> (i32, i32) {
    %c0_i32 = arith.constant 0 : i32
    %c0_i32_0 = arith.constant 0 : i32
    %c0_i32_1 = arith.constant 0 : i32
    return %c0_i32, %c0_i32_0 : i32, i32
  }
  func.func @transform_5(%arg0: i32, %arg1: i32) -> (i32, i32) {
    %c0_i32 = arith.constant 0 : i32
    %c0_i32_0 = arith.constant 0 : i32
    %c0_i32_1 = arith.constant 0 : i32
    return %c0_i32, %c0_i32_0 : i32, i32
  }
  func.func @transform_6(%arg0: i32, %arg1: i32) -> (i32, i32) {
    %c0_i32 = arith.constant 0 : i32
    %c0_i32_0 = arith.constant 0 : i32
    %c0_i32_1 = arith.constant 0 : i32
    return %c0_i32, %c0_i32_0 : i32, i32
  }
  func.func @transform_7(%arg0: i32, %arg1: i32) -> i32 {
    %c0_i32 = arith.constant 0 : i32
    %c0_i32_0 = arith.constant 0 : i32
    return %c0_i32 : i32
  }
  func.func @transform_8(%arg0: i32, %arg1: i32) -> (i32, i32, i32) {
    %c0_i32 = arith.constant 0 : i32
    %c0_i32_0 = arith.constant 0 : i32
    return %arg0, %c0_i32, %arg1 : i32, i32, i32
  }
}

</mosaic_0001>

<llo_original>
// kernel: tpu_custom_call.1
$region0: #{tpu_custom_call.1}
  #allocation0 [shape = 'u32[]', space=smem, size = 0x4, offset = 0x4, fixed_abs, tag = 'smem constant byte address 0x4 - core index']
  #allocation1 [shape = 'u32[144,128]{1,0:T(1,128)}', space=vmem, size = 0x12000, scoped, tag = 'internal scratch']
  %s0 = inlined_call_operand.vmem [shape: f32[2,4,18,18], index: 0, kind: input, shape index: {}]
  %s1 = inlined_call_operand.vmem [shape: f32[8,4], index: 1, kind: input, shape index: {}]
  %s2 = inlined_call_operand.vmem [shape: f32[8,1], index: 2, kind: input, shape index: {}]
  %s3 = inlined_call_operand.vmem [shape: f32[8,72], index: 3, kind: input, shape index: {}]
  %s4 = inlined_call_operand.vmem [shape: f32[8,1], index: 4, kind: input, shape index: {}]
  %s5 = inlined_call_operand.vmem [shape: f32[16,12], index: 5, kind: input, shape index: {}]
  %s6 = inlined_call_operand.vmem [shape: f32[16,1], index: 6, kind: input, shape index: {}]
  %s7 = inlined_call_operand.vmem [shape: f32[3], index: 7, kind: input, shape index: {}]
  %s8 = inlined_call_operand.hbm [shape: f32[2,16,256], index: 8, kind: output, shape index: {}]
  %s9 = sld [smem:[#allocation0]]
  $region69: #{tpu_custom_call.1} parent=0
    _
  %s11 = ssub.s32 1, %s9
  %s12 = scalar_select 0, %s11, %s9
  $region1: #{tpu_custom_call.1} parent=0
    #allocation2 [shape = 'u8[512]{0}', space=smem, size = 0x200, scoped, tag = 'input window, operand 7, single buffered']
    #allocation3 [shape = 's32[2]{0}', space=sflag, size = 0x8, scoped, tag = 'scoped memory for tpu_custom_call.1']
    #allocation4 [shape = 's32[2]{0}', space=sflag, size = 0x8, scoped, tag = 'scoped memory for tpu_custom_call.1']
    #allocation5 [shape = 'u8[16384]{0}', space=vmem, size = 0x4000, scoped, tag = 'output window, operand 0']
    %13 = vsyncpa [#allocation4], 0
    %14 = vsyncpa [#allocation3], 0
    %s15 = scalar_lea.sflag [#allocation3], 1
    %16 = vsyncpa %s15, 0
    loop: start=0, step=1, limit=6
    $region2: #{tpu_custom_call.1} parent=1 // loop_pre_header
      _
    $region3: #{tpu_custom_call.1} parent=1 // loop_header
      %s18 = sphi 0, %s22
      %p19 = scmp.ge.s32.totalorder %s18, 6
      %s25 = sphi 0, %s37
      %s26 = sphi 0, %s33
      %s27 = sphi 0, %s25
      %s28 = sphi 0, %s26
      %s29 = sphi 0, %s27
      %s30 = sphi 0, %s28
      %s40 = sphi 0, %s42
      %s43 = sphi 0, %s40
      %s44 = sphi 0, %s43
      %s60 = sphi 0, %s44
      %s64 = sphi 0, %s64
      %s66 = sphi 0, %s64
      %s67 = sphi 0, %s66
      %s81 = sphi 0, %s67
      %s85 = sphi 0, %s85
      %s87 = sphi 0, %s85
      %s88 = sphi 0, %s87
      %s102 = sphi 0, %s88
      %s106 = sphi 0, %s106
      %s108 = sphi 0, %s106
      %s109 = sphi 0, %s108
      %s123 = sphi 0, %s109
      %s127 = sphi 0, %s127
      %s129 = sphi 0, %s127
      %s130 = sphi 0, %s129
      %s144 = sphi 0, %s130
      %s148 = sphi 0, %s148
      %s150 = sphi 0, %s148
      %s151 = sphi 0, %s150
      %s165 = sphi 0, %s151
      %s169 = sphi 0, %s169
      %s171 = sphi 0, %s169
      %s172 = sphi 0, %s171
      %s186 = sphi 0, %s172
      %s190 = sphi 0, %s190
      %s192 = sphi 0, %s190
      %s193 = sphi 0, %s192
      %s207 = sphi 0, %s193
      %s215 = sphi 0, %s217
      %s218 = sphi 0, %s215
      %s219 = sphi 0, %s218
      %s235 = sphi 0, %s219
    $region4: #{tpu_custom_call.1} parent=1 // loop_header_branch
      %21 = sbr.rel (%p19) target = $region8
    $region5: #{tpu_custom_call.1} parent=1 // loop_body
      %s23 = ssub.s32 %s18, 1
      %s24 = ssub.s32 %s18, 2
      %s31 = sadd.s32 1, %s26
      %p32 = scmp.ge.s32.totalorder %s31, 2
      %s33 = scalar_select %p32, 0, %s31
      %s34 = sadd.s32 1, %s25
      %s35 = scalar_select %p32, %s34, %s25
      %p36 = scmp.ge.s32.totalorder %s35, 2
      %s37 = scalar_select %p36, 0, %s35
      %s38 = ssub.s32 %s25, %s37
      %p39 = scmp.eq.s32.totalorder %s38, 0
      %s41 = sadd.s32 %s40, 1
      %s42 = scalar_select %p39, %s40, %s41
      %p45 = pneg %p39
      %p46 = scmp.eq.s32.totalorder %s18, 3
      %p47 = por %p45, %p46
      %p48 = scmp.ne.s32.totalorder %s40, %s43
      %p49 = scmp.eq.s32.totalorder %s18, 0
      %p50 = por %p48, %p49
      %p51 = scmp.ne.s32.totalorder %s40, %s43
      %p52 = scmp.eq.s32.totalorder %s23, 3
      %p53 = por %p51, %p52
      %p54 = scmp.ne.s32.totalorder %s43, %s44
      %p55 = scmp.eq.s32.totalorder %s23, 0
      %p56 = por %p54, %p55
      %p57 = scmp.ne.s32.totalorder %s43, %s44
      %p58 = scmp.eq.s32.totalorder %s24, 3
      %p59 = por %p57, %p58
      %p61 = scmp.ne.s32.totalorder %s44, %s60
      %p62 = scmp.eq.s32.totalorder %s24, 0
      %p63 = por %p61, %p62
      %s65 = sadd.s32 %s64, 1
      %p68 = scmp.eq.s32.totalorder %s18, 3
      %p69 = scmp.ne.s32.totalorder %s64, %s66
      %p70 = scmp.eq.s32.totalorder %s18, 0
      %p71 = por %p69, %p70
      %p72 = scmp.ne.s32.totalorder %s64, %s66
      %p73 = scmp.eq.s32.totalorder %s23, 3
      %p74 = por %p72, %p73
      %p75 = scmp.ne.s32.totalorder %s66, %s67
      %p76 = scmp.eq.s32.totalorder %s23, 0
      %p77 = por %p75, %p76
      %p78 = scmp.ne.s32.totalorder %s66, %s67
      %p79 = scmp.eq.s32.totalorder %s24, 3
      %p80 = por %p78, %p79
      %p82 = scmp.ne.s32.totalorder %s67, %s81
      %p83 = scmp.eq.s32.totalorder %s24, 0
      %p84 = por %p82, %p83
      %s86 = sadd.s32 %s85, 1
      %p89 = scmp.eq.s32.totalorder %s18, 3
      %p90 = scmp.ne.s32.totalorder %s85, %s87
      %p91 = scmp.eq.s32.totalorder %s18, 0
      %p92 = por %p90, %p91
      %p93 = scmp.ne.s32.totalorder %s85, %s87
      %p94 = scmp.eq.s32.totalorder %s23, 3
      %p95 = por %p93, %p94
      %p96 = scmp.ne.s32.totalorder %s87, %s88
      %p97 = scmp.eq.s32.totalorder %s23, 0
      %p98 = por %p96, %p97
      %p99 = scmp.ne.s32.totalorder %s87, %s88
      %p100 = scmp.eq.s32.totalorder %s24, 3
      %p101 = por %p99, %p100
      %p103 = scmp.ne.s32.totalorder %s88, %s102
      %p104 = scmp.eq.s32.totalorder %s24, 0
      %p105 = por %p103, %p104
      %s107 = sadd.s32 %s106, 1
      %p110 = scmp.eq.s32.totalorder %s18, 3
      %p111 = scmp.ne.s32.totalorder %s106, %s108
      %p112 = scmp.eq.s32.totalorder %s18, 0
      %p113 = por %p111, %p112
      %p114 = scmp.ne.s32.totalorder %s106, %s108
      %p115 = scmp.eq.s32.totalorder %s23, 3
      %p116 = por %p114, %p115
      %p117 = scmp.ne.s32.totalorder %s108, %s109
      %p118 = scmp.eq.s32.totalorder %s23, 0
      %p119 = por %p117, %p118
      %p120 = scmp.ne.s32.totalorder %s108, %s109
      %p121 = scmp.eq.s32.totalorder %s24, 3
      %p122 = por %p120, %p121
      %p124 = scmp.ne.s32.totalorder %s109, %s123
      %p125 = scmp.eq.s32.totalorder %s24, 0
      %p126 = por %p124, %p125
      %s128 = sadd.s32 %s127, 1
      %p131 = scmp.eq.s32.totalorder %s18, 3
      %p132 = scmp.ne.s32.totalorder %s127, %s129
      %p133 = scmp.eq.s32.totalorder %s18, 0
      %p134 = por %p132, %p133
      %p135 = scmp.ne.s32.totalorder %s127, %s129
      %p136 = scmp.eq.s32.totalorder %s23, 3
      %p137 = por %p135, %p136
      %p138 = scmp.ne.s32.totalorder %s129, %s130
      %p139 = scmp.eq.s32.totalorder %s23, 0
      %p140 = por %p138, %p139
      %p141 = scmp.ne.s32.totalorder %s129, %s130
      %p142 = scmp.eq.s32.totalorder %s24, 3
      %p143 = por %p141, %p142
      %p145 = scmp.ne.s32.totalorder %s130, %s144
      %p146 = scmp.eq.s32.totalorder %s24, 0
      %p147 = por %p145, %p146
      %s149 = sadd.s32 %s148, 1
      %p152 = scmp.eq.s32.totalorder %s18, 3
      %p153 = scmp.ne.s32.totalorder %s148, %s150
      %p154 = scmp.eq.s32.totalorder %s18, 0
      %p155 = por %p153, %p154
      %p156 = scmp.ne.s32.totalorder %s148, %s150
      %p157 = scmp.eq.s32.totalorder %s23, 3
      %p158 = por %p156, %p157
      %p159 = scmp.ne.s32.totalorder %s150, %s151
      %p160 = scmp.eq.s32.totalorder %s23, 0
      %p161 = por %p159, %p160
      %p162 = scmp.ne.s32.totalorder %s150, %s151
      %p163 = scmp.eq.s32.totalorder %s24, 3
      %p164 = por %p162, %p163
      %p166 = scmp.ne.s32.totalorder %s151, %s165
      %p167 = scmp.eq.s32.totalorder %s24, 0
      %p168 = por %p166, %p167
      %s170 = sadd.s32 %s169, 1
      %p173 = scmp.eq.s32.totalorder %s18, 3
      %p174 = scmp.ne.s32.totalorder %s169, %s171
      %p175 = scmp.eq.s32.totalorder %s18, 0
      %p176 = por %p174, %p175
      %p177 = scmp.ne.s32.totalorder %s169, %s171
      %p178 = scmp.eq.s32.totalorder %s23, 3
      %p179 = por %p177, %p178
      %p180 = scmp.ne.s32.totalorder %s171, %s172
      %p181 = scmp.eq.s32.totalorder %s23, 0
      %p182 = por %p180, %p181
      %p183 = scmp.ne.s32.totalorder %s171, %s172
      %p184 = scmp.eq.s32.totalorder %s24, 3
      %p185 = por %p183, %p184
      %p187 = scmp.ne.s32.totalorder %s172, %s186
      %p188 = scmp.eq.s32.totalorder %s24, 0
      %p189 = por %p187, %p188
      %s191 = sadd.s32 %s190, 1
      %p194 = scmp.eq.s32.totalorder %s18, 3
      %p195 = scmp.ne.s32.totalorder %s190, %s192
      %p196 = scmp.eq.s32.totalorder %s18, 0
      %p197 = por %p195, %p196
      %p198 = scmp.ne.s32.totalorder %s190, %s192
      %p199 = scmp.eq.s32.totalorder %s23, 3
      %p200 = por %p198, %p199
      %p201 = scmp.ne.s32.totalorder %s192, %s193
      %p202 = scmp.eq.s32.totalorder %s23, 0
      %p203 = por %p201, %p202
      %p204 = scmp.ne.s32.totalorder %s192, %s193
      %p205 = scmp.eq.s32.totalorder %s24, 3
      %p206 = por %p204, %p205
      %p208 = scmp.ne.s32.totalorder %s193, %s207
      %p209 = scmp.eq.s32.totalorder %s24, 0
      %p210 = por %p208, %p209
      %s211 = ssub.s32 %s25, %s37
      %s212 = ssub.s32 %s26, %s33
      %s213 = sor.u32 %s211, %s212
      %p214 = scmp.eq.s32.totalorder %s213, 0
      %s216 = sadd.s32 %s215, 1
      %s217 = scalar_select %p214, %s215, %s216
      %p220 = pneg %p214
      %p221 = scmp.eq.s32.totalorder %s18, 3
      %p222 = por %p220, %p221
      %p223 = scmp.ne.s32.totalorder %s215, %s218
      %p224 = scmp.eq.s32.totalorder %s18, 0
      %p225 = por %p223, %p224
      %p226 = scmp.ne.s32.totalorder %s215, %s218
      %p227 = scmp.eq.s32.totalorder %s23, 3
      %p228 = por %p226, %p227
      %p229 = scmp.ne.s32.totalorder %s218, %s219
      %p230 = scmp.eq.s32.totalorder %s23, 0
      %p231 = por %p229, %p230
      %p232 = scmp.ne.s32.totalorder %s218, %s219
      %p233 = scmp.eq.s32.totalorder %s24, 3
      %p234 = por %p232, %p233
      %p236 = scmp.ne.s32.totalorder %s219, %s235
      %p237 = scmp.eq.s32.totalorder %s24, 0
      %p238 = por %p236, %p237
      %p239 = scmp.le.s32.totalorder 1, %s18
      %p240 = scmp.lt.s32.totalorder %s18, 5
      %p241 = pnand %p239, %p240
      %p242 = pneg %p241
      // Predicated region
      $region9: #{tpu_custom_call.1} parent=5 // pred_check
        _
      $region10: #{tpu_custom_call.1} parent=5 // pred_check_branch
        %244 = sbr.rel (%p241) target = $region12
      $region11: #{tpu_custom_call.1} parent=5 // pred_region
        %s245 = ssub.s32 %s18, 1
        // Predicated region
        $region13: #{tpu_custom_call.1} parent=11 // pred_check
          %p246 = pneg %p77
        $region14: #{tpu_custom_call.1} parent=11 // pred_check_branch
          %248 = sbr.rel (%p246) target = $region16
        $region15: #{tpu_custom_call.1} parent=11 // pred_region
          _
        $region16: #{tpu_custom_call.1} parent=11 // pred_fallthru
          _
        // Predicated region
        $region17: #{tpu_custom_call.1} parent=11 // pred_check
          %p249 = pneg %p98
        $region18: #{tpu_custom_call.1} parent=11 // pred_check_branch
          %251 = sbr.rel (%p249) target = $region20
        $region19: #{tpu_custom_call.1} parent=11 // pred_region
          _
        $region20: #{tpu_custom_call.1} parent=11 // pred_fallthru
          _
        // Predicated region
        $region21: #{tpu_custom_call.1} parent=11 // pred_check
          %p252 = pneg %p119
        $region22: #{tpu_custom_call.1} parent=11 // pred_check_branch
          %254 = sbr.rel (%p252) target = $region24
        $region23: #{tpu_custom_call.1} parent=11 // pred_region
          _
        $region24: #{tpu_custom_call.1} parent=11 // pred_fallthru
          _
        // Predicated region
        $region25: #{tpu_custom_call.1} parent=11 // pred_check
          %p255 = pneg %p140
        $region26: #{tpu_custom_call.1} parent=11 // pred_check_branch
          %257 = sbr.rel (%p255) target = $region28
        $region27: #{tpu_custom_call.1} parent=11 // pred_region
          _
        $region28: #{tpu_custom_call.1} parent=11 // pred_fallthru
          _
        // Predicated region
        $region29: #{tpu_custom_call.1} parent=11 // pred_check
          %p258 = pneg %p161
        $region30: #{tpu_custom_call.1} parent=11 // pred_check_branch
          %260 = sbr.rel (%p258) target = $region32
        $region31: #{tpu_custom_call.1} parent=11 // pred_region
          _
        $region32: #{tpu_custom_call.1} parent=11 // pred_fallthru
          _
        // Predicated region
        $region33: #{tpu_custom_call.1} parent=11 // pred_check
          %p261 = pneg %p182
        $region34: #{tpu_custom_call.1} parent=11 // pred_check_branch
          %263 = sbr.rel (%p261) target = $region36
        $region35: #{tpu_custom_call.1} parent=11 // pred_region
          _
        $region36: #{tpu_custom_call.1} parent=11 // pred_fallthru
          _
        // Predicated region
        $region37: #{tpu_custom_call.1} parent=11 // pred_check
          %p264 = pneg %p203
        $region38: #{tpu_custom_call.1} parent=11 // pred_check_branch
          %266 = sbr.rel (%p264) target = $region40
        $region39: #{tpu_custom_call.1} parent=11 // pred_region
          %s268 = ssub.s32 16, 16
          %269 = vsyncadd [#allocation4], %s268
          %s271 = sshll.u32 %s7, 4
          %s272 = int_to_ptr.vmem [resolvable:$true] %s271
          %274 = dma.vmem_to_smem %s272, 16, [#allocation2], [#allocation4]
        $region40: #{tpu_custom_call.1} parent=11 // pred_fallthru
          _
      $region12: #{tpu_custom_call.1} parent=5 // pred_fallthru
        _
      %p275 = scmp.lt.s32.totalorder %s18, 4
      // Predicated region
      $region41: #{tpu_custom_call.1} parent=5 // pred_check
        %p276 = pneg %p275
      $region42: #{tpu_custom_call.1} parent=5 // pred_check_branch
        %278 = sbr.rel (%p276) target = $region44
      $region43: #{tpu_custom_call.1} parent=5 // pred_region
        // Predicated region
        $region45: #{tpu_custom_call.1} parent=43 // pred_check
          %p279 = pneg %p50
        $region46: #{tpu_custom_call.1} parent=43 // pred_check_branch
          %281 = sbr.rel (%p279) target = $region48
        $region47: #{tpu_custom_call.1} parent=43 // pred_region
          %p282 = scmp.lt.s32.totalorder %s25, 1
          %s283 = scalar_select %p282, %s25, 1
          %s284 = smul.addr %s283, 12
          %s285 = smul.addr %s284, 8
          %s286 = scalar_lea.vmem %s0, %s285
        $region48: #{tpu_custom_call.1} parent=43 // pred_fallthru
          _
      $region44: #{tpu_custom_call.1} parent=5 // pred_fallthru
        _
      %p287 = scmp.le.s32.totalorder 1, %s18
      %p288 = scmp.lt.s32.totalorder %s18, 5
      %p289 = pnand %p287, %p288
      %p290 = pneg %p289
      // Predicated region
      $region49: #{tpu_custom_call.1} parent=5 // pred_check
        _
      $region50: #{tpu_custom_call.1} parent=5 // pred_check_branch
        %292 = sbr.rel (%p289) target = $region52
      $region51: #{tpu_custom_call.1} parent=5 // pred_region
        %s293 = ssub.s32 %s18, 1
        // Predicated region
        $region53: #{tpu_custom_call.1} parent=51 // pred_check
          %p294 = pneg %p203
        $region54: #{tpu_custom_call.1} parent=51 // pred_check_branch
          %296 = sbr.rel (%p294) target = $region56
        $region55: #{tpu_custom_call.1} parent=51 // pred_region
          %297 = dma.done [#allocation4], 16
        $region56: #{tpu_custom_call.1} parent=51 // pred_fallthru
          _
        %298 = sfence
        %p299 = scmp.lt.s32.totalorder %s27, 1
        %s300 = scalar_select %p299, %s27, 1
        %s301 = smul.addr %s300, 12
        %s302 = smul.addr %s301, 8
        %s303 = scalar_lea.vmem %s0, %s302
        %p304 = pneg %p56
        %p305 = pneg %p53
        %p306 = pneg %p77
        %p307 = pneg %p74
        %p308 = pneg %p98
        %p309 = pneg %p95
        %p310 = pneg %p119
        %p311 = pneg %p116
        %p312 = pneg %p140
        %p313 = pneg %p137
        %p314 = pneg %p161
        %p315 = pneg %p158
        %p316 = pneg %p182
        %p317 = pneg %p179
        %p318 = pneg %p203
        %p319 = pneg %p200
        %p320 = pneg %p231
        %p321 = pneg %p228
        %s322 = sand.u32 %s218, 1
        %s323 = scalar_lea.sflag [#allocation3], %s322
        %s324 = sand.u32 %s218, 1
        %s325 = smul.addr %s324, 16
        %s326 = scalar_lea.vmem [#allocation5], %s325
        %p327 = scmp.lt.s32.totalorder %s27, 1
        %s328 = scalar_select %p327, %s27, 1
        %s329 = smul.addr %s328, 12
        %s330 = smul.addr %s329, 8
        %s331 = scalar_lea.vmem %s0, %s330
        %s332 = smul.u32 %s28, 8
        %s333 = sld [smem:[#allocation2]]
        %s334 = sld [smem:[#allocation2 + $0x1]]
        %s335 = sld [smem:[#allocation2 + $0x2]]
        %s336 = scalar_lea.vmem %s331, %s332
        %v337 = vld [vmem:[%s336] sm:$0xff]
        %v338 = vld [vmem:[%s336 + $0x8] sm:$0x3]
        %v339 = vld [vmem:[%s336 + $0x18] sm:$0xff]
        %v340 = vld [vmem:[%s336 + $0x20] sm:$0x3]
        %v341 = vld [vmem:[%s336 + $0x30] sm:$0xff]
        %v342 = vld [vmem:[%s336 + $0x38] sm:$0x3]
        %v343 = vld [vmem:[%s336 + $0x48] sm:$0xff]
        %v344 = vld [vmem:[%s336 + $0x50] sm:$0x3]
        %v345 = vld [vmem:[%s1] sm:$0xff]
        %v346 = vcombine.low %v337, %v341
        %v347 = vcombine.high %v337, %v341
        %v349 = vunpack.c.l.s4 1983009808
        %v350 = vunpack.c.0.s8 %v349
        %v351 = vlaneseq
        %v352 = vshrl.u32 %v351, 7
        %v353 = vsub.s32 %v350, %v352
        %v354 = vrot.slane %v346, %v353
        %v356 = vunpack.c.l.s4 1983009808
        %v357 = vunpack.c.0.s8 %v356
        %v358 = vlaneseq
        %v359 = vshrl.u32 %v358, 7
        %v360 = vsub.s32 %v357, %v359
        %v361 = vrot.slane %v347, %v360
        %v362 = vcombine.low %v339, %v343
        %v363 = vcombine.high %v339, %v343
        %v365 = vunpack.c.l.s4 1983009808
        %v366 = vunpack.c.0.s8 %v365
        %v367 = vlaneseq
        %v368 = vshrl.u32 %v367, 7
        %v369 = vsub.s32 %v366, %v368
        %v370 = vrot.slane %v362, %v369
        %v372 = vunpack.c.l.s4 1983009808
        %v373 = vunpack.c.0.s8 %v372
        %v374 = vlaneseq
        %v375 = vshrl.u32 %v374, 7
        %v376 = vsub.s32 %v373, %v375
        %v377 = vrot.slane %v363, %v376
        %v378 = vcombine.low %v354, %v370
        %v379 = vcombine.high %v354, %v370
        %v381 = vunpack.c.l.s4 1934713408
        %v382 = vunpack.c.0.s8 %v381
        %v383 = vlaneseq
        %v384 = vshrl.u32 %v383, 7
        %v385 = vsub.s32 %v382, %v384
        %v386 = vrot.slane %v378, %v385
        %v388 = vunpack.c.l.s4 1934713408
        %v389 = vunpack.c.0.s8 %v388
        %v390 = vlaneseq
        %v391 = vshrl.u32 %v390, 7
        %v392 = vsub.s32 %v389, %v391
        %v393 = vrot.slane %v379, %v392
        %v394 = vcombine.low %v361, %v377
        %v395 = vcombine.high %v361, %v377
        %v397 = vunpack.c.l.s4 1934713408
        %v398 = vunpack.c.0.s8 %v397
        %v399 = vlaneseq
        %v400 = vshrl.u32 %v399, 7
        %v401 = vsub.s32 %v398, %v400
        %v402 = vrot.slane %v394, %v401
        %v404 = vunpack.c.l.s4 1934713408
        %v405 = vunpack.c.0.s8 %v404
        %v406 = vlaneseq
        %v407 = vshrl.u32 %v406, 7
        %v408 = vsub.s32 %v405, %v407
        %v409 = vrot.slane %v395, %v408
        %v410 = vcombine.high %v386, 0.0
        %v411 = vcombine.high %v393, 0.0
        %v412 = vcombine.high %v402, 0.0
        %v413 = vcombine.high %v409, 0.0
        %v414 = vcombine.low %v338, %v342
        %v416 = vunpack.c.l.s4 1983009808
        %v417 = vunpack.c.0.s8 %v416
        %v418 = vlaneseq
        %v419 = vshrl.u32 %v418, 7
        %v420 = vsub.s32 %v417, %v419
        %v421 = vrot.slane %v414, %v420
        %v422 = vcombine.low %v340, %v344
        %v424 = vunpack.c.l.s4 1983009808
        %v425 = vunpack.c.0.s8 %v424
        %v426 = vlaneseq
        %v427 = vshrl.u32 %v426, 7
        %v428 = vsub.s32 %v425, %v427
        %v429 = vrot.slane %v422, %v428
        %v430 = vcombine.low %v421, %v429
        %v432 = vunpack.c.l.s4 1934713408
        %v433 = vunpack.c.0.s8 %v432
        %v434 = vlaneseq
        %v435 = vshrl.u32 %v434, 7
        %v436 = vsub.s32 %v433, %v435
        %v437 = vrot.slane %v430, %v436
        %v438 = vcombine.high %v437, 0.0
        %440 = vrot.lane.b32.xlu0 %v410, 18
        %v441 = vpop.permute.xlu0 %440
        %444 = vrot.lane.b32.xlu0 %v393, 36
        %v445 = vpop.permute.xlu0 %444
        %448 = vrot.lane.b32.xlu0 %v411, 54
        %v449 = vpop.permute.xlu0 %448
        %452 = vrot.lane.b32.xlu0 %v402, 72
        %v453 = vpop.permute.xlu0 %452
        %456 = vrot.lane.b32.xlu0 %v412, 90
        %v457 = vpop.permute.xlu0 %456
        %460 = vrot.lane.b32.xlu0 %v409, 108
        %v461 = vpop.permute.xlu0 %460
        %464 = vrot.lane.b32.xlu0 %v413, 126
        %v465 = vpop.permute.xlu0 %464
        %468 = vrot.lane.b32.xlu0 %v437, 16
        %v469 = vpop.permute.xlu0 %468
        %472 = vrot.lane.b32.xlu0 %v438, 34
        %v473 = vpop.permute.xlu0 %472
        %vm475 = vcmask 146432
        %v476 = vsel %vm475, %v386, %v441
        %vm477 = vcmask 293888
        %v478 = vsel %vm477, %v476, %v445
        %vm479 = vcmask 441344
        %v480 = vsel %vm479, %v478, %v449
        %vm481 = vcmask 588800
        %v482 = vsel %vm481, %v480, %v453
        %vm483 = vcmask 736256
        %v484 = vsel %vm483, %v482, %v457
        %vm485 = vcmask 883712
        %v486 = vsel %vm485, %v484, %v461
        %vm487 = vcmask 1031168
        %v488 = vsel %vm487, %v486, %v465
        %vm489 = vcmask 130048
        %v490 = vsel %vm489, %v465, %v469
        %vm491 = vcmask 277504
        %v492 = vsel %vm491, %v490, %v473
        %v493 = vld [vmem:[%s2] sm:$0xff]
        %495 = vset.pattern.permute.xlu0 0
        %496 = vperm.xlu0 %495, %v493
        %v497 = vpop.permute.xlu0 %496
        %vm499 = vcmask 31744
        %v501 = vsel %vm499, %v345, 0
        %vm503 = vcmask 1043456
        %v505 = vsel %vm503, %v488, 0
        %v508 = vsel %vm503, %v492, 0
        %510 = vmatprep.subr.mxu0 0.0
        %511 = vmatpush1.msra.mxu0 0.0
        %512 = vmatprep.subr.mxu0 0.0
        %513 = vmatpush1.msra.mxu0 0.0
        %514 = vmatprep.subr.mxu0 0.0
        %515 = vmatpush1.msra.mxu0 0.0
        %516 = vmatprep.subr.mxu0 0.0
        %517 = vmatpush1.msra.mxu0 0.0
        %518 = vmatprep.subr.mxu0 0.0
        %519 = vmatpush1.msra.mxu0 0.0
        %520 = vmatprep.subr.mxu0 0.0
        %521 = vmatpush1.msra.mxu0 0.0
        %522 = vmatprep.subr.mxu0 0.0
        %523 = vmatpush1.msra.mxu0 0.0
        %524 = vmatprep.subr.mxu0 0.0
        %525 = vmatpush1.msra.mxu0 0.0
        %526 = vmatprep.subr.mxu0 0.0
        %527 = vmatpush1.msra.mxu0 0.0
        %528 = vmatprep.subr.mxu0 0.0
        %529 = vmatpush1.msra.mxu0 0.0
        %530 = vmatprep.subr.mxu0 0.0
        %531 = vmatpush1.msra.mxu0 0.0
        %532 = vmatprep.subr.mxu0 0.0
        %533 = vmatpush1.msra.mxu0 0.0
        %534 = vmatprep.subr.mxu0 0.0
        %535 = vmatpush1.msra.mxu0 0.0
        %536 = vmatprep.subr.mxu0 0.0
        %537 = vmatpush1.msra.mxu0 0.0
        %538 = vmatprep.subr.mxu0 0.0
        %539 = vmatpush1.msra.mxu0 0.0
        %540 = vmatprep.subr.mxu0 %v508
        %541 = vmatpush1.msra.mxu0 %v505
        %542 = vmatprep.subr.mxu0 0.0
        %543 = vmatpush2.msra.mxu0 0.0
        %544 = vmatprep.subr.mxu0 0.0
        %545 = vmatpush2.msra.mxu0 0.0
        %546 = vmatprep.subr.mxu0 0.0
        %547 = vmatpush2.msra.mxu0 0.0
        %548 = vmatprep.subr.mxu0 0.0
        %549 = vmatpush2.msra.mxu0 0.0
        %550 = vmatprep.subr.mxu0 0.0
        %551 = vmatpush2.msra.mxu0 0.0
        %552 = vmatprep.subr.mxu0 0.0
        %553 = vmatpush2.msra.mxu0 0.0
        %554 = vmatprep.subr.mxu0 0.0
        %555 = vmatpush2.msra.mxu0 0.0
        %556 = vmatprep.subr.mxu0 0.0
        %557 = vmatpush2.msra.mxu0 0.0
        %558 = vmatprep.subr.mxu0 0.0
        %559 = vmatpush2.msra.mxu0 0.0
        %560 = vmatprep.subr.mxu0 0.0
        %561 = vmatpush2.msra.mxu0 0.0
        %562 = vmatprep.subr.mxu0 0.0
        %563 = vmatpush2.msra.mxu0 0.0
        %564 = vmatprep.subr.mxu0 0.0
        %565 = vmatpush2.msra.mxu0 0.0
        %566 = vmatprep.subr.mxu0 0.0
        %567 = vmatpush2.msra.mxu0 0.0
        %568 = vmatprep.subr.mxu0 0.0
        %569 = vmatpush2.msra.mxu0 0.0
        %570 = vmatprep.subr.mxu0 0.0
        %571 = vmatpush2.msra.mxu0 0.0
        %572 = vmatprep.subr.mxu0 0.0
        %573 = vmatpush2.msra.mxu0 0.0
        %574 = vmatprep.mubr.f32.mxu0 0.0
        %575 = vmatmul.mubr.f32.gmra.mxu0 %v501
        %v576 = vpop.f32.mrf.mxu0
        %v577 = vadd.f32 %v497, %v576
        %v578 = vpop.f32.mrf.mxu0
        %v579 = vadd.f32 %v497, %v578
        %580 = vdwg.mxu0
        %vm581 = vcmp.ge.f32.partialorder %v577, 0.0
        %vm582 = vcmp.ge.f32.partialorder %v579, 0.0
        %v583 = vstv %s333
        %v584 = vmul.f32 %v583, %v577
        %v585 = vmul.f32 %v583, %v579
        %v586 = vsel %vm581, %v577, %v584
        %v587 = vsel %vm582, %v579, %v585
        %589 = vrot.lane.b32.xlu0 %v586, 110
        %v590 = vpop.permute.xlu0 %589
        %592 = vrot.lane.b32.xlu0 %v586, 92
        %v593 = vpop.permute.xlu0 %592
        %595 = vrot.lane.b32.xlu0 %v586, 74
        %v596 = vpop.permute.xlu0 %595
        %598 = vrot.lane.b32.xlu0 %v586, 56
        %v599 = vpop.permute.xlu0 %598
        %601 = vrot.lane.b32.xlu0 %v586, 38
        %v602 = vpop.permute.xlu0 %601
        %604 = vrot.lane.b32.xlu0 %v586, 20
        %v605 = vpop.permute.xlu0 %604
        %608 = vrot.lane.b32.xlu0 %v586, 2
        %v609 = vpop.permute.xlu0 %608
        %610 = vrot.lane.b32.xlu0 %v587, 2
        %v611 = vpop.permute.xlu0 %610
        %vm612 = vcmask 15360
        %v613 = vsel %vm612, %v609, %v611
        %615 = vrot.lane.b32.xlu0 %v587, 112
        %v616 = vpop.permute.xlu0 %615
        %618 = vrot.lane.b32.xlu0 %v587, 94
        %v619 = vpop.permute.xlu0 %618
        %v621 = vcombine.low %v586, %v593
        %v622 = vcombine.high %v586, %v593
        %v624 = vunpack.c.l.s4 1983009808
        %v625 = vunpack.c.0.s8 %v624
        %v626 = vlaneseq
        %v627 = vshrl.u32 %v626, 7
        %v628 = vsub.s32 %v625, %v627
        %v629 = vrot.slane %v621, %v628
        %v631 = vunpack.c.l.s4 1983009808
        %v632 = vunpack.c.0.s8 %v631
        %v633 = vlaneseq
        %v634 = vshrl.u32 %v633, 7
        %v635 = vsub.s32 %v632, %v634
        %v636 = vrot.slane %v622, %v635
        %v637 = vcombine.low %v590, %v596
        %v638 = vcombine.high %v590, %v596
        %v640 = vunpack.c.l.s4 1983009808
        %v641 = vunpack.c.0.s8 %v640
        %v642 = vlaneseq
        %v643 = vshrl.u32 %v642, 7
        %v644 = vsub.s32 %v641, %v643
        %v645 = vrot.slane %v637, %v644
        %v647 = vunpack.c.l.s4 1983009808
        %v648 = vunpack.c.0.s8 %v647
        %v649 = vlaneseq
        %v650 = vshrl.u32 %v649, 7
        %v651 = vsub.s32 %v648, %v650
        %v652 = vrot.slane %v638, %v651
        %v653 = vcombine.low %v599, %v605
        %v654 = vcombine.high %v599, %v605
        %v656 = vunpack.c.l.s4 1983009808
        %v657 = vunpack.c.0.s8 %v656
        %v658 = vlaneseq
        %v659 = vshrl.u32 %v658, 7
        %v660 = vsub.s32 %v657, %v659
        %v661 = vrot.slane %v653, %v660
        %v663 = vunpack.c.l.s4 1983009808
        %v664 = vunpack.c.0.s8 %v663
        %v665 = vlaneseq
        %v666 = vshrl.u32 %v665, 7
        %v667 = vsub.s32 %v664, %v666
        %v668 = vrot.slane %v654, %v667
        %v669 = vcombine.low %v602, %v613
        %v670 = vcombine.high %v602, %v613
        %v672 = vunpack.c.l.s4 1983009808
        %v673 = vunpack.c.0.s8 %v672
        %v674 = vlaneseq
        %v675 = vshrl.u32 %v674, 7
        %v676 = vsub.s32 %v673, %v675
        %v677 = vrot.slane %v669, %v676
        %v679 = vunpack.c.l.s4 1983009808
        %v680 = vunpack.c.0.s8 %v679
        %v681 = vlaneseq
        %v682 = vshrl.u32 %v681, 7
        %v683 = vsub.s32 %v680, %v682
        %v684 = vrot.slane %v670, %v683
        %v685 = vcombine.low %v629, %v645
        %v686 = vcombine.high %v629, %v645
        %v688 = vunpack.c.l.s4 1934713408
        %v689 = vunpack.c.0.s8 %v688
        %v690 = vlaneseq
        %v691 = vshrl.u32 %v690, 7
        %v692 = vsub.s32 %v689, %v691
        %v693 = vrot.slane %v685, %v692
        %v695 = vunpack.c.l.s4 1934713408
        %v696 = vunpack.c.0.s8 %v695
        %v697 = vlaneseq
        %v698 = vshrl.u32 %v697, 7
        %v699 = vsub.s32 %v696, %v698
        %v700 = vrot.slane %v686, %v699
        %v701 = vcombine.low %v636, %v652
        %v702 = vcombine.high %v636, %v652
        %v704 = vunpack.c.l.s4 1934713408
        %v705 = vunpack.c.0.s8 %v704
        %v706 = vlaneseq
        %v707 = vshrl.u32 %v706, 7
        %v708 = vsub.s32 %v705, %v707
        %v709 = vrot.slane %v701, %v708
        %v711 = vunpack.c.l.s4 1934713408
        %v712 = vunpack.c.0.s8 %v711
        %v713 = vlaneseq
        %v714 = vshrl.u32 %v713, 7
        %v715 = vsub.s32 %v712, %v714
        %v716 = vrot.slane %v702, %v715
        %v717 = vcombine.low %v661, %v677
        %v718 = vcombine.high %v661, %v677
        %v720 = vunpack.c.l.s4 1934713408
        %v721 = vunpack.c.0.s8 %v720
        %v722 = vlaneseq
        %v723 = vshrl.u32 %v722, 7
        %v724 = vsub.s32 %v721, %v723
        %v725 = vrot.slane %v717, %v724
        %v727 = vunpack.c.l.s4 1934713408
        %v728 = vunpack.c.0.s8 %v727
        %v729 = vlaneseq
        %v730 = vshrl.u32 %v729, 7
        %v731 = vsub.s32 %v728, %v730
        %v732 = vrot.slane %v718, %v731
        %v733 = vcombine.low %v668, %v684
        %v734 = vcombine.high %v668, %v684
        %v736 = vunpack.c.l.s4 1934713408
        %v737 = vunpack.c.0.s8 %v736
        %v738 = vlaneseq
        %v739 = vshrl.u32 %v738, 7
        %v740 = vsub.s32 %v737, %v739
        %v741 = vrot.slane %v733, %v740
        %v743 = vunpack.c.l.s4 1934713408
        %v744 = vunpack.c.0.s8 %v743
        %v745 = vlaneseq
        %v746 = vshrl.u32 %v745, 7
        %v747 = vsub.s32 %v744, %v746
        %v748 = vrot.slane %v734, %v747
        %v749 = vcombine.low %v693, %v725
        %v750 = vcombine.high %v693, %v725
        %v751 = vcombine.low %v700, %v732
        %v752 = vcombine.high %v700, %v732
        %v753 = vcombine.low %v709, %v741
        %v754 = vcombine.high %v709, %v741
        %v755 = vcombine.low %v716, %v748
        %v756 = vcombine.high %v716, %v748
        %v757 = vcombine.high %v616, 0.0
        %v759 = vunpack.c.l.s4 1983009808
        %v760 = vunpack.c.0.s8 %v759
        %v761 = vlaneseq
        %v762 = vshrl.u32 %v761, 7
        %v763 = vsub.s32 %v760, %v762
        %v764 = vrot.slane %v616, %v763
        %v766 = vunpack.c.l.s4 1983009808
        %v767 = vunpack.c.0.s8 %v766
        %v768 = vlaneseq
        %v769 = vshrl.u32 %v768, 7
        %v770 = vsub.s32 %v767, %v769
        %v771 = vrot.slane %v757, %v770
        %v772 = vcombine.high %v619, 0.0
        %v774 = vunpack.c.l.s4 1983009808
        %v775 = vunpack.c.0.s8 %v774
        %v776 = vlaneseq
        %v777 = vshrl.u32 %v776, 7
        %v778 = vsub.s32 %v775, %v777
        %v779 = vrot.slane %v619, %v778
        %v781 = vunpack.c.l.s4 1983009808
        %v782 = vunpack.c.0.s8 %v781
        %v783 = vlaneseq
        %v784 = vshrl.u32 %v783, 7
        %v785 = vsub.s32 %v782, %v784
        %v786 = vrot.slane %v772, %v785
        %v787 = vcombine.low %v764, %v779
        %v788 = vcombine.high %v764, %v779
        %v790 = vunpack.c.l.s4 1934713408
        %v791 = vunpack.c.0.s8 %v790
        %v792 = vlaneseq
        %v793 = vshrl.u32 %v792, 7
        %v794 = vsub.s32 %v791, %v793
        %v795 = vrot.slane %v787, %v794
        %v797 = vunpack.c.l.s4 1934713408
        %v798 = vunpack.c.0.s8 %v797
        %v799 = vlaneseq
        %v800 = vshrl.u32 %v799, 7
        %v801 = vsub.s32 %v798, %v800
        %v802 = vrot.slane %v788, %v801
        %v803 = vcombine.low %v771, %v786
        %v804 = vcombine.high %v771, %v786
        %v806 = vunpack.c.l.s4 1934713408
        %v807 = vunpack.c.0.s8 %v806
        %v808 = vlaneseq
        %v809 = vshrl.u32 %v808, 7
        %v810 = vsub.s32 %v807, %v809
        %v811 = vrot.slane %v803, %v810
        %v813 = vunpack.c.l.s4 1934713408
        %v814 = vunpack.c.0.s8 %v813
        %v815 = vlaneseq
        %v816 = vshrl.u32 %v815, 7
        %v817 = vsub.s32 %v814, %v816
        %v818 = vrot.slane %v804, %v817
        %v819 = vcombine.high %v795, 0.0
        %v820 = vcombine.high %v802, 0.0
        %v821 = vcombine.high %v811, 0.0
        %v822 = vcombine.high %v818, 0.0
        %v823 = vlaneseq
        %v824 = vshrl.u32 %v823, 7
        %v825 = vadd.s32 %v824, 8
        %v826 = vstv %s332
        %v827 = vadd.s32 %v826, %v824
        %v828 = vadd.s32 %v826, %v825
        %v829 = vlaneseq
        %v830 = vand.u32 %v829, 127
        %vm831 = vcmp.ge.s32.totalorder %v827, 1
        %vm832 = vcmp.ge.s32.totalorder %v828, 1
        %vm833 = vcmp.le.s32.totalorder %v827, 16
        %vm834 = vcmp.le.s32.totalorder %v828, 16
        %vm835 = vmand %vm831, %vm833
        %vm836 = vmand %vm832, %vm834
        %vm837 = vcmp.ge.s32.totalorder %v830, 1
        %vm838 = vmand %vm835, %vm837
        %vm839 = vmand %vm836, %vm837
        %vm840 = vcmp.le.s32.totalorder %v830, 16
        %vm841 = vmand %vm838, %vm840
        %vm842 = vmand %vm839, %vm840
        %v843 = vsel %vm841, 1, 0
        %v844 = vsel %vm842, 1, 0
        %vm845 = vcmp.eq.s32.totalorder %v843, 1
        %vm846 = vcmp.eq.s32.totalorder %v844, 1
        %v847 = vsel %vm845, %v749, 0.0
        %v848 = vsel %vm846, %v795, 0.0
        %v849 = vsel %vm845, %v750, 0.0
        %v850 = vsel %vm846, %v819, 0.0
        %v851 = vsel %vm845, %v751, 0.0
        %v852 = vsel %vm846, %v802, 0.0
        %v853 = vsel %vm845, %v752, 0.0
        %v854 = vsel %vm846, %v820, 0.0
        %v855 = vsel %vm845, %v753, 0.0
        %v856 = vsel %vm846, %v811, 0.0
        %v857 = vsel %vm845, %v754, 0.0
        %v858 = vsel %vm846, %v821, 0.0
        %v859 = vsel %vm845, %v755, 0.0
        %v860 = vsel %vm846, %v818, 0.0
        %v861 = vsel %vm845, %v756, 0.0
        %v862 = vsel %vm846, %v822, 0.0
        %871 = vrot.lane.b32.xlu0 %v847, 127
        %v872 = vpop.permute.xlu0 %871
        %873 = vrot.lane.b32.xlu0 %v849, 127
        %v874 = vpop.permute.xlu0 %873
        %875 = vrot.lane.b32.xlu0 %v851, 127
        %v876 = vpop.permute.xlu0 %875
        %877 = vrot.lane.b32.xlu0 %v853, 127
        %v878 = vpop.permute.xlu0 %877
        %879 = vrot.lane.b32.xlu0 %v855, 127
        %v880 = vpop.permute.xlu0 %879
        %881 = vrot.lane.b32.xlu0 %v857, 127
        %v882 = vpop.permute.xlu0 %881
        %883 = vrot.lane.b32.xlu0 %v859, 127
        %v884 = vpop.permute.xlu0 %883
        %885 = vrot.lane.b32.xlu0 %v861, 127
        %v886 = vpop.permute.xlu0 %885
        %895 = vrot.lane.b32.xlu0 %v847, 126
        %v896 = vpop.permute.xlu0 %895
        %897 = vrot.lane.b32.xlu0 %v849, 126
        %v898 = vpop.permute.xlu0 %897
        %899 = vrot.lane.b32.xlu0 %v851, 126
        %v900 = vpop.permute.xlu0 %899
        %901 = vrot.lane.b32.xlu0 %v853, 126
        %v902 = vpop.permute.xlu0 %901
        %903 = vrot.lane.b32.xlu0 %v855, 126
        %v904 = vpop.permute.xlu0 %903
        %905 = vrot.lane.b32.xlu0 %v857, 126
        %v906 = vpop.permute.xlu0 %905
        %907 = vrot.lane.b32.xlu0 %v859, 126
        %v908 = vpop.permute.xlu0 %907
        %909 = vrot.lane.b32.xlu0 %v861, 126
        %v910 = vpop.permute.xlu0 %909
        %vm927 = vcmask 1046528
        %v928 = vrot.slane %v847, 1
        %v929 = vrot.slane %v848, 1
        %v930 = vsel %vm927, %v928, %v929
        %v931 = vrot.slane %v849, 1
        %v932 = vrot.slane %v850, 1
        %v933 = vsel %vm927, %v931, %v932
        %v934 = vrot.slane %v851, 1
        %v935 = vrot.slane %v852, 1
        %v936 = vsel %vm927, %v934, %v935
        %v937 = vrot.slane %v853, 1
        %v938 = vrot.slane %v854, 1
        %v939 = vsel %vm927, %v937, %v938
        %v940 = vrot.slane %v855, 1
        %v941 = vrot.slane %v856, 1
        %v942 = vsel %vm927, %v940, %v941
        %v943 = vrot.slane %v857, 1
        %v944 = vrot.slane %v858, 1
        %v945 = vsel %vm927, %v943, %v944
        %v946 = vrot.slane %v859, 1
        %v947 = vrot.slane %v860, 1
        %v948 = vsel %vm927, %v946, %v947
        %v949 = vrot.slane %v861, 1
        %v950 = vrot.slane %v862, 1
        %v951 = vsel %vm927, %v949, %v950
        %960 = vrot.lane.b32.xlu0 %v930, 127
        %v961 = vpop.permute.xlu0 %960
        %962 = vrot.lane.b32.xlu0 %v933, 127
        %v963 = vpop.permute.xlu0 %962
        %964 = vrot.lane.b32.xlu0 %v936, 127
        %v965 = vpop.permute.xlu0 %964
        %966 = vrot.lane.b32.xlu0 %v939, 127
        %v967 = vpop.permute.xlu0 %966
        %968 = vrot.lane.b32.xlu0 %v942, 127
        %v969 = vpop.permute.xlu0 %968
        %970 = vrot.lane.b32.xlu0 %v945, 127
        %v971 = vpop.permute.xlu0 %970
        %972 = vrot.lane.b32.xlu0 %v948, 127
        %v973 = vpop.permute.xlu0 %972
        %974 = vrot.lane.b32.xlu0 %v951, 127
        %v975 = vpop.permute.xlu0 %974
        %984 = vrot.lane.b32.xlu0 %v930, 126
        %v985 = vpop.permute.xlu0 %984
        %986 = vrot.lane.b32.xlu0 %v933, 126
        %v987 = vpop.permute.xlu0 %986
        %988 = vrot.lane.b32.xlu0 %v936, 126
        %v989 = vpop.permute.xlu0 %988
        %990 = vrot.lane.b32.xlu0 %v939, 126
        %v991 = vpop.permute.xlu0 %990
        %992 = vrot.lane.b32.xlu0 %v942, 126
        %v993 = vpop.permute.xlu0 %992
        %994 = vrot.lane.b32.xlu0 %v945, 126
        %v995 = vpop.permute.xlu0 %994
        %996 = vrot.lane.b32.xlu0 %v948, 126
        %v997 = vpop.permute.xlu0 %996
        %998 = vrot.lane.b32.xlu0 %v951, 126
        %v999 = vpop.permute.xlu0 %998
        %vm1008 = vcmask 1045504
        %v1009 = vrot.slane %v847, 2
        %v1010 = vrot.slane %v848, 2
        %v1011 = vsel %vm1008, %v1009, %v1010
        %v1012 = vrot.slane %v849, 2
        %v1013 = vrot.slane %v850, 2
        %v1014 = vsel %vm1008, %v1012, %v1013
        %v1015 = vrot.slane %v851, 2
        %v1016 = vrot.slane %v852, 2
        %v1017 = vsel %vm1008, %v1015, %v1016
        %v1018 = vrot.slane %v853, 2
        %v1019 = vrot.slane %v854, 2
        %v1020 = vsel %vm1008, %v1018, %v1019
        %v1021 = vrot.slane %v855, 2
        %v1022 = vrot.slane %v856, 2
        %v1023 = vsel %vm1008, %v1021, %v1022
        %v1024 = vrot.slane %v857, 2
        %v1025 = vrot.slane %v858, 2
        %v1026 = vsel %vm1008, %v1024, %v1025
        %v1027 = vrot.slane %v859, 2
        %v1028 = vrot.slane %v860, 2
        %v1029 = vsel %vm1008, %v1027, %v1028
        %v1030 = vrot.slane %v861, 2
        %v1031 = vrot.slane %v862, 2
        %v1032 = vsel %vm1008, %v1030, %v1031
        %1041 = vrot.lane.b32.xlu0 %v1011, 127
        %v1042 = vpop.permute.xlu0 %1041
        %1043 = vrot.lane.b32.xlu0 %v1014, 127
        %v1044 = vpop.permute.xlu0 %1043
        %1045 = vrot.lane.b32.xlu0 %v1017, 127
        %v1046 = vpop.permute.xlu0 %1045
        %1047 = vrot.lane.b32.xlu0 %v1020, 127
        %v1048 = vpop.permute.xlu0 %1047
        %1049 = vrot.lane.b32.xlu0 %v1023, 127
        %v1050 = vpop.permute.xlu0 %1049
        %1051 = vrot.lane.b32.xlu0 %v1026, 127
        %v1052 = vpop.permute.xlu0 %1051
        %1053 = vrot.lane.b32.xlu0 %v1029, 127
        %v1054 = vpop.permute.xlu0 %1053
        %1055 = vrot.lane.b32.xlu0 %v1032, 127
        %v1056 = vpop.permute.xlu0 %1055
        %1065 = vrot.lane.b32.xlu0 %v1011, 126
        %v1066 = vpop.permute.xlu0 %1065
        %1067 = vrot.lane.b32.xlu0 %v1014, 126
        %v1068 = vpop.permute.xlu0 %1067
        %1069 = vrot.lane.b32.xlu0 %v1017, 126
        %v1070 = vpop.permute.xlu0 %1069
        %1071 = vrot.lane.b32.xlu0 %v1020, 126
        %v1072 = vpop.permute.xlu0 %1071
        %1073 = vrot.lane.b32.xlu0 %v1023, 126
        %v1074 = vpop.permute.xlu0 %1073
        %1075 = vrot.lane.b32.xlu0 %v1026, 126
        %v1076 = vpop.permute.xlu0 %1075
        %1077 = vrot.lane.b32.xlu0 %v1029, 126
        %v1078 = vpop.permute.xlu0 %1077
        %1079 = vrot.lane.b32.xlu0 %v1032, 126
        %v1080 = vpop.permute.xlu0 %1079
        %v1089 = vcombine.low %v847, %v851
        %v1090 = vcombine.high %v847, %v851
        %v1092 = vunpack.c.l.s4 1983009808
        %v1093 = vunpack.c.0.s8 %v1092
        %v1094 = vlaneseq
        %v1095 = vshrl.u32 %v1094, 7
        %v1096 = vsub.s32 %v1093, %v1095
        %v1097 = vrot.slane %v1089, %v1096
        %v1099 = vunpack.c.l.s4 1983009808
        %v1100 = vunpack.c.0.s8 %v1099
        %v1101 = vlaneseq
        %v1102 = vshrl.u32 %v1101, 7
        %v1103 = vsub.s32 %v1100, %v1102
        %v1104 = vrot.slane %v1090, %v1103
        %v1105 = vcombine.low %v849, %v853
        %v1106 = vcombine.high %v849, %v853
        %v1108 = vunpack.c.l.s4 1983009808
        %v1109 = vunpack.c.0.s8 %v1108
        %v1110 = vlaneseq
        %v1111 = vshrl.u32 %v1110, 7
        %v1112 = vsub.s32 %v1109, %v1111
        %v1113 = vrot.slane %v1105, %v1112
        %v1115 = vunpack.c.l.s4 1983009808
        %v1116 = vunpack.c.0.s8 %v1115
        %v1117 = vlaneseq
        %v1118 = vshrl.u32 %v1117, 7
        %v1119 = vsub.s32 %v1116, %v1118
        %v1120 = vrot.slane %v1106, %v1119
        %v1121 = vcombine.low %v855, %v859
        %v1122 = vcombine.high %v855, %v859
        %v1124 = vunpack.c.l.s4 1983009808
        %v1125 = vunpack.c.0.s8 %v1124
        %v1126 = vlaneseq
        %v1127 = vshrl.u32 %v1126, 7
        %v1128 = vsub.s32 %v1125, %v1127
        %v1129 = vrot.slane %v1121, %v1128
        %v1131 = vunpack.c.l.s4 1983009808
        %v1132 = vunpack.c.0.s8 %v1131
        %v1133 = vlaneseq
        %v1134 = vshrl.u32 %v1133, 7
        %v1135 = vsub.s32 %v1132, %v1134
        %v1136 = vrot.slane %v1122, %v1135
        %v1137 = vcombine.low %v857, %v861
        %v1138 = vcombine.high %v857, %v861
        %v1140 = vunpack.c.l.s4 1983009808
        %v1141 = vunpack.c.0.s8 %v1140
        %v1142 = vlaneseq
        %v1143 = vshrl.u32 %v1142, 7
        %v1144 = vsub.s32 %v1141, %v1143
        %v1145 = vrot.slane %v1137, %v1144
        %v1147 = vunpack.c.l.s4 1983009808
        %v1148 = vunpack.c.0.s8 %v1147
        %v1149 = vlaneseq
        %v1150 = vshrl.u32 %v1149, 7
        %v1151 = vsub.s32 %v1148, %v1150
        %v1152 = vrot.slane %v1138, %v1151
        %v1153 = vcombine.low %v1097, %v1113
        %v1154 = vcombine.high %v1097, %v1113
        %v1156 = vunpack.c.l.s4 1934713408
        %v1157 = vunpack.c.0.s8 %v1156
        %v1158 = vlaneseq
        %v1159 = vshrl.u32 %v1158, 7
        %v1160 = vsub.s32 %v1157, %v1159
        %v1161 = vrot.slane %v1153, %v1160
        %v1163 = vunpack.c.l.s4 1934713408
        %v1164 = vunpack.c.0.s8 %v1163
        %v1165 = vlaneseq
        %v1166 = vshrl.u32 %v1165, 7
        %v1167 = vsub.s32 %v1164, %v1166
        %v1168 = vrot.slane %v1154, %v1167
        %v1169 = vcombine.low %v1104, %v1120
        %v1170 = vcombine.high %v1104, %v1120
        %v1172 = vunpack.c.l.s4 1934713408
        %v1173 = vunpack.c.0.s8 %v1172
        %v1174 = vlaneseq
        %v1175 = vshrl.u32 %v1174, 7
        %v1176 = vsub.s32 %v1173, %v1175
        %v1177 = vrot.slane %v1169, %v1176
        %v1179 = vunpack.c.l.s4 1934713408
        %v1180 = vunpack.c.0.s8 %v1179
        %v1181 = vlaneseq
        %v1182 = vshrl.u32 %v1181, 7
        %v1183 = vsub.s32 %v1180, %v1182
        %v1184 = vrot.slane %v1170, %v1183
        %v1185 = vcombine.low %v1129, %v1145
        %v1186 = vcombine.high %v1129, %v1145
        %v1188 = vunpack.c.l.s4 1934713408
        %v1189 = vunpack.c.0.s8 %v1188
        %v1190 = vlaneseq
        %v1191 = vshrl.u32 %v1190, 7
        %v1192 = vsub.s32 %v1189, %v1191
        %v1193 = vrot.slane %v1185, %v1192
        %v1195 = vunpack.c.l.s4 1934713408
        %v1196 = vunpack.c.0.s8 %v1195
        %v1197 = vlaneseq
        %v1198 = vshrl.u32 %v1197, 7
        %v1199 = vsub.s32 %v1196, %v1198
        %v1200 = vrot.slane %v1186, %v1199
        %v1201 = vcombine.low %v1136, %v1152
        %v1202 = vcombine.high %v1136, %v1152
        %v1204 = vunpack.c.l.s4 1934713408
        %v1205 = vunpack.c.0.s8 %v1204
        %v1206 = vlaneseq
        %v1207 = vshrl.u32 %v1206, 7
        %v1208 = vsub.s32 %v1205, %v1207
        %v1209 = vrot.slane %v1201, %v1208
        %v1211 = vunpack.c.l.s4 1934713408
        %v1212 = vunpack.c.0.s8 %v1211
        %v1213 = vlaneseq
        %v1214 = vshrl.u32 %v1213, 7
        %v1215 = vsub.s32 %v1212, %v1214
        %v1216 = vrot.slane %v1202, %v1215
        %v1217 = vcombine.low %v1161, %v1193
        %v1218 = vcombine.high %v1161, %v1193
        %v1219 = vcombine.low %v1168, %v1200
        %v1220 = vcombine.high %v1168, %v1200
        %v1221 = vcombine.low %v1177, %v1209
        %v1222 = vcombine.high %v1177, %v1209
        %v1223 = vcombine.low %v1184, %v1216
        %v1224 = vcombine.high %v1184, %v1216
        %v1225 = vcombine.low %v872, %v876
        %v1226 = vcombine.high %v872, %v876
        %v1228 = vunpack.c.l.s4 1983009808
        %v1229 = vunpack.c.0.s8 %v1228
        %v1230 = vlaneseq
        %v1231 = vshrl.u32 %v1230, 7
        %v1232 = vsub.s32 %v1229, %v1231
        %v1233 = vrot.slane %v1225, %v1232
        %v1235 = vunpack.c.l.s4 1983009808
        %v1236 = vunpack.c.0.s8 %v1235
        %v1237 = vlaneseq
        %v1238 = vshrl.u32 %v1237, 7
        %v1239 = vsub.s32 %v1236, %v1238
        %v1240 = vrot.slane %v1226, %v1239
        %v1241 = vcombine.low %v874, %v878
        %v1242 = vcombine.high %v874, %v878
        %v1244 = vunpack.c.l.s4 1983009808
        %v1245 = vunpack.c.0.s8 %v1244
        %v1246 = vlaneseq
        %v1247 = vshrl.u32 %v1246, 7
        %v1248 = vsub.s32 %v1245, %v1247
        %v1249 = vrot.slane %v1241, %v1248
        %v1251 = vunpack.c.l.s4 1983009808
        %v1252 = vunpack.c.0.s8 %v1251
        %v1253 = vlaneseq
        %v1254 = vshrl.u32 %v1253, 7
        %v1255 = vsub.s32 %v1252, %v1254
        %v1256 = vrot.slane %v1242, %v1255
        %v1257 = vcombine.low %v880, %v884
        %v1258 = vcombine.high %v880, %v884
        %v1260 = vunpack.c.l.s4 1983009808
        %v1261 = vunpack.c.0.s8 %v1260
        %v1262 = vlaneseq
        %v1263 = vshrl.u32 %v1262, 7
        %v1264 = vsub.s32 %v1261, %v1263
        %v1265 = vrot.slane %v1257, %v1264
        %v1267 = vunpack.c.l.s4 1983009808
        %v1268 = vunpack.c.0.s8 %v1267
        %v1269 = vlaneseq
        %v1270 = vshrl.u32 %v1269, 7
        %v1271 = vsub.s32 %v1268, %v1270
        %v1272 = vrot.slane %v1258, %v1271
        %v1273 = vcombine.low %v882, %v886
        %v1274 = vcombine.high %v882, %v886
        %v1276 = vunpack.c.l.s4 1983009808
        %v1277 = vunpack.c.0.s8 %v1276
        %v1278 = vlaneseq
        %v1279 = vshrl.u32 %v1278, 7
        %v1280 = vsub.s32 %v1277, %v1279
        %v1281 = vrot.slane %v1273, %v1280
        %v1283 = vunpack.c.l.s4 1983009808
        %v1284 = vunpack.c.0.s8 %v1283
        %v1285 = vlaneseq
        %v1286 = vshrl.u32 %v1285, 7
        %v1287 = vsub.s32 %v1284, %v1286
        %v1288 = vrot.slane %v1274, %v1287
        %v1289 = vcombine.low %v1233, %v1249
        %v1290 = vcombine.high %v1233, %v1249
        %v1292 = vunpack.c.l.s4 1934713408
        %v1293 = vunpack.c.0.s8 %v1292
        %v1294 = vlaneseq
        %v1295 = vshrl.u32 %v1294, 7
        %v1296 = vsub.s32 %v1293, %v1295
        %v1297 = vrot.slane %v1289, %v1296
        %v1299 = vunpack.c.l.s4 1934713408
        %v1300 = vunpack.c.0.s8 %v1299
        %v1301 = vlaneseq
        %v1302 = vshrl.u32 %v1301, 7
        %v1303 = vsub.s32 %v1300, %v1302
        %v1304 = vrot.slane %v1290, %v1303
        %v1305 = vcombine.low %v1240, %v1256
        %v1306 = vcombine.high %v1240, %v1256
        %v1308 = vunpack.c.l.s4 1934713408
        %v1309 = vunpack.c.0.s8 %v1308
        %v1310 = vlaneseq
        %v1311 = vshrl.u32 %v1310, 7
        %v1312 = vsub.s32 %v1309, %v1311
        %v1313 = vrot.slane %v1305, %v1312
        %v1315 = vunpack.c.l.s4 1934713408
        %v1316 = vunpack.c.0.s8 %v1315
        %v1317 = vlaneseq
        %v1318 = vshrl.u32 %v1317, 7
        %v1319 = vsub.s32 %v1316, %v1318
        %v1320 = vrot.slane %v1306, %v1319
        %v1321 = vcombine.low %v1265, %v1281
        %v1322 = vcombine.high %v1265, %v1281
        %v1324 = vunpack.c.l.s4 1934713408
        %v1325 = vunpack.c.0.s8 %v1324
        %v1326 = vlaneseq
        %v1327 = vshrl.u32 %v1326, 7
        %v1328 = vsub.s32 %v1325, %v1327
        %v1329 = vrot.slane %v1321, %v1328
        %v1331 = vunpack.c.l.s4 1934713408
        %v1332 = vunpack.c.0.s8 %v1331
        %v1333 = vlaneseq
        %v1334 = vshrl.u32 %v1333, 7
        %v1335 = vsub.s32 %v1332, %v1334
        %v1336 = vrot.slane %v1322, %v1335
        %v1337 = vcombine.low %v1272, %v1288
        %v1338 = vcombine.high %v1272, %v1288
        %v1340 = vunpack.c.l.s4 1934713408
        %v1341 = vunpack.c.0.s8 %v1340
        %v1342 = vlaneseq
        %v1343 = vshrl.u32 %v1342, 7
        %v1344 = vsub.s32 %v1341, %v1343
        %v1345 = vrot.slane %v1337, %v1344
        %v1347 = vunpack.c.l.s4 1934713408
        %v1348 = vunpack.c.0.s8 %v1347
        %v1349 = vlaneseq
        %v1350 = vshrl.u32 %v1349, 7
        %v1351 = vsub.s32 %v1348, %v1350
        %v1352 = vrot.slane %v1338, %v1351
        %v1353 = vcombine.low %v1297, %v1329
        %v1354 = vcombine.high %v1297, %v1329
        %v1355 = vcombine.low %v1304, %v1336
        %v1356 = vcombine.high %v1304, %v1336
        %v1357 = vcombine.low %v1313, %v1345
        %v1358 = vcombine.high %v1313, %v1345
        %v1359 = vcombine.low %v1320, %v1352
        %v1360 = vcombine.high %v1320, %v1352
        %v1361 = vcombine.low %v896, %v900
        %v1362 = vcombine.high %v896, %v900
        %v1364 = vunpack.c.l.s4 1983009808
        %v1365 = vunpack.c.0.s8 %v1364
        %v1366 = vlaneseq
        %v1367 = vshrl.u32 %v1366, 7
        %v1368 = vsub.s32 %v1365, %v1367
        %v1369 = vrot.slane %v1361, %v1368
        %v1371 = vunpack.c.l.s4 1983009808
        %v1372 = vunpack.c.0.s8 %v1371
        %v1373 = vlaneseq
        %v1374 = vshrl.u32 %v1373, 7
        %v1375 = vsub.s32 %v1372, %v1374
        %v1376 = vrot.slane %v1362, %v1375
        %v1377 = vcombine.low %v898, %v902
        %v1378 = vcombine.high %v898, %v902
        %v1380 = vunpack.c.l.s4 1983009808
        %v1381 = vunpack.c.0.s8 %v1380
        %v1382 = vlaneseq
        %v1383 = vshrl.u32 %v1382, 7
        %v1384 = vsub.s32 %v1381, %v1383
        %v1385 = vrot.slane %v1377, %v1384
        %v1387 = vunpack.c.l.s4 1983009808
        %v1388 = vunpack.c.0.s8 %v1387
        %v1389 = vlaneseq
        %v1390 = vshrl.u32 %v1389, 7
        %v1391 = vsub.s32 %v1388, %v1390
        %v1392 = vrot.slane %v1378, %v1391
        %v1393 = vcombine.low %v904, %v908
        %v1394 = vcombine.high %v904, %v908
        %v1396 = vunpack.c.l.s4 1983009808
        %v1397 = vunpack.c.0.s8 %v1396
        %v1398 = vlaneseq
        %v1399 = vshrl.u32 %v1398, 7
        %v1400 = vsub.s32 %v1397, %v1399
        %v1401 = vrot.slane %v1393, %v1400
        %v1403 = vunpack.c.l.s4 1983009808
        %v1404 = vunpack.c.0.s8 %v1403
        %v1405 = vlaneseq
        %v1406 = vshrl.u32 %v1405, 7
        %v1407 = vsub.s32 %v1404, %v1406
        %v1408 = vrot.slane %v1394, %v1407
        %v1409 = vcombine.low %v906, %v910
        %v1410 = vcombine.high %v906, %v910
        %v1412 = vunpack.c.l.s4 1983009808
        %v1413 = vunpack.c.0.s8 %v1412
        %v1414 = vlaneseq
        %v1415 = vshrl.u32 %v1414, 7
        %v1416 = vsub.s32 %v1413, %v1415
        %v1417 = vrot.slane %v1409, %v1416
        %v1419 = vunpack.c.l.s4 1983009808
        %v1420 = vunpack.c.0.s8 %v1419
        %v1421 = vlaneseq
        %v1422 = vshrl.u32 %v1421, 7
        %v1423 = vsub.s32 %v1420, %v1422
        %v1424 = vrot.slane %v1410, %v1423
        %v1425 = vcombine.low %v1369, %v1385
        %v1426 = vcombine.high %v1369, %v1385
        %v1428 = vunpack.c.l.s4 1934713408
        %v1429 = vunpack.c.0.s8 %v1428
        %v1430 = vlaneseq
        %v1431 = vshrl.u32 %v1430, 7
        %v1432 = vsub.s32 %v1429, %v1431
        %v1433 = vrot.slane %v1425, %v1432
        %v1435 = vunpack.c.l.s4 1934713408
        %v1436 = vunpack.c.0.s8 %v1435
        %v1437 = vlaneseq
        %v1438 = vshrl.u32 %v1437, 7
        %v1439 = vsub.s32 %v1436, %v1438
        %v1440 = vrot.slane %v1426, %v1439
        %v1441 = vcombine.low %v1376, %v1392
        %v1442 = vcombine.high %v1376, %v1392
        %v1444 = vunpack.c.l.s4 1934713408
        %v1445 = vunpack.c.0.s8 %v1444
        %v1446 = vlaneseq
        %v1447 = vshrl.u32 %v1446, 7
        %v1448 = vsub.s32 %v1445, %v1447
        %v1449 = vrot.slane %v1441, %v1448
        %v1451 = vunpack.c.l.s4 1934713408
        %v1452 = vunpack.c.0.s8 %v1451
        %v1453 = vlaneseq
        %v1454 = vshrl.u32 %v1453, 7
        %v1455 = vsub.s32 %v1452, %v1454
        %v1456 = vrot.slane %v1442, %v1455
        %v1457 = vcombine.low %v1401, %v1417
        %v1458 = vcombine.high %v1401, %v1417
        %v1460 = vunpack.c.l.s4 1934713408
        %v1461 = vunpack.c.0.s8 %v1460
        %v1462 = vlaneseq
        %v1463 = vshrl.u32 %v1462, 7
        %v1464 = vsub.s32 %v1461, %v1463
        %v1465 = vrot.slane %v1457, %v1464
        %v1467 = vunpack.c.l.s4 1934713408
        %v1468 = vunpack.c.0.s8 %v1467
        %v1469 = vlaneseq
        %v1470 = vshrl.u32 %v1469, 7
        %v1471 = vsub.s32 %v1468, %v1470
        %v1472 = vrot.slane %v1458, %v1471
        %v1473 = vcombine.low %v1408, %v1424
        %v1474 = vcombine.high %v1408, %v1424
        %v1476 = vunpack.c.l.s4 1934713408
        %v1477 = vunpack.c.0.s8 %v1476
        %v1478 = vlaneseq
        %v1479 = vshrl.u32 %v1478, 7
        %v1480 = vsub.s32 %v1477, %v1479
        %v1481 = vrot.slane %v1473, %v1480
        %v1483 = vunpack.c.l.s4 1934713408
        %v1484 = vunpack.c.0.s8 %v1483
        %v1485 = vlaneseq
        %v1486 = vshrl.u32 %v1485, 7
        %v1487 = vsub.s32 %v1484, %v1486
        %v1488 = vrot.slane %v1474, %v1487
        %v1489 = vcombine.low %v1433, %v1465
        %v1490 = vcombine.high %v1433, %v1465
        %v1491 = vcombine.low %v1440, %v1472
        %v1492 = vcombine.high %v1440, %v1472
        %v1493 = vcombine.low %v1449, %v1481
        %v1494 = vcombine.high %v1449, %v1481
        %v1495 = vcombine.low %v1456, %v1488
        %v1496 = vcombine.high %v1456, %v1488
        %v1497 = vcombine.low %v930, %v936
        %v1498 = vcombine.high %v930, %v936
        %v1500 = vunpack.c.l.s4 1983009808
        %v1501 = vunpack.c.0.s8 %v1500
        %v1502 = vlaneseq
        %v1503 = vshrl.u32 %v1502, 7
        %v1504 = vsub.s32 %v1501, %v1503
        %v1505 = vrot.slane %v1497, %v1504
        %v1507 = vunpack.c.l.s4 1983009808
        %v1508 = vunpack.c.0.s8 %v1507
        %v1509 = vlaneseq
        %v1510 = vshrl.u32 %v1509, 7
        %v1511 = vsub.s32 %v1508, %v1510
        %v1512 = vrot.slane %v1498, %v1511
        %v1513 = vcombine.low %v933, %v939
        %v1514 = vcombine.high %v933, %v939
        %v1516 = vunpack.c.l.s4 1983009808
        %v1517 = vunpack.c.0.s8 %v1516
        %v1518 = vlaneseq
        %v1519 = vshrl.u32 %v1518, 7
        %v1520 = vsub.s32 %v1517, %v1519
        %v1521 = vrot.slane %v1513, %v1520
        %v1523 = vunpack.c.l.s4 1983009808
        %v1524 = vunpack.c.0.s8 %v1523
        %v1525 = vlaneseq
        %v1526 = vshrl.u32 %v1525, 7
        %v1527 = vsub.s32 %v1524, %v1526
        %v1528 = vrot.slane %v1514, %v1527
        %v1529 = vcombine.low %v942, %v948
        %v1530 = vcombine.high %v942, %v948
        %v1532 = vunpack.c.l.s4 1983009808
        %v1533 = vunpack.c.0.s8 %v1532
        %v1534 = vlaneseq
        %v1535 = vshrl.u32 %v1534, 7
        %v1536 = vsub.s32 %v1533, %v1535
        %v1537 = vrot.slane %v1529, %v1536
        %v1539 = vunpack.c.l.s4 1983009808
        %v1540 = vunpack.c.0.s8 %v1539
        %v1541 = vlaneseq
        %v1542 = vshrl.u32 %v1541, 7
        %v1543 = vsub.s32 %v1540, %v1542
        %v1544 = vrot.slane %v1530, %v1543
        %v1545 = vcombine.low %v945, %v951
        %v1546 = vcombine.high %v945, %v951
        %v1548 = vunpack.c.l.s4 1983009808
        %v1549 = vunpack.c.0.s8 %v1548
        %v1550 = vlaneseq
        %v1551 = vshrl.u32 %v1550, 7
        %v1552 = vsub.s32 %v1549, %v1551
        %v1553 = vrot.slane %v1545, %v1552
        %v1555 = vunpack.c.l.s4 1983009808
        %v1556 = vunpack.c.0.s8 %v1555
        %v1557 = vlaneseq
        %v1558 = vshrl.u32 %v1557, 7
        %v1559 = vsub.s32 %v1556, %v1558
        %v1560 = vrot.slane %v1546, %v1559
        %v1561 = vcombine.low %v1505, %v1521
        %v1562 = vcombine.high %v1505, %v1521
        %v1564 = vunpack.c.l.s4 1934713408
        %v1565 = vunpack.c.0.s8 %v1564
        %v1566 = vlaneseq
        %v1567 = vshrl.u32 %v1566, 7
        %v1568 = vsub.s32 %v1565, %v1567
        %v1569 = vrot.slane %v1561, %v1568
        %v1571 = vunpack.c.l.s4 1934713408
        %v1572 = vunpack.c.0.s8 %v1571
        %v1573 = vlaneseq
        %v1574 = vshrl.u32 %v1573, 7
        %v1575 = vsub.s32 %v1572, %v1574
        %v1576 = vrot.slane %v1562, %v1575
        %v1577 = vcombine.low %v1512, %v1528
        %v1578 = vcombine.high %v1512, %v1528
        %v1580 = vunpack.c.l.s4 1934713408
        %v1581 = vunpack.c.0.s8 %v1580
        %v1582 = vlaneseq
        %v1583 = vshrl.u32 %v1582, 7
        %v1584 = vsub.s32 %v1581, %v1583
        %v1585 = vrot.slane %v1577, %v1584
        %v1587 = vunpack.c.l.s4 1934713408
        %v1588 = vunpack.c.0.s8 %v1587
        %v1589 = vlaneseq
        %v1590 = vshrl.u32 %v1589, 7
        %v1591 = vsub.s32 %v1588, %v1590
        %v1592 = vrot.slane %v1578, %v1591
        %v1593 = vcombine.low %v1537, %v1553
        %v1594 = vcombine.high %v1537, %v1553
        %v1596 = vunpack.c.l.s4 1934713408
        %v1597 = vunpack.c.0.s8 %v1596
        %v1598 = vlaneseq
        %v1599 = vshrl.u32 %v1598, 7
        %v1600 = vsub.s32 %v1597, %v1599
        %v1601 = vrot.slane %v1593, %v1600
        %v1603 = vunpack.c.l.s4 1934713408
        %v1604 = vunpack.c.0.s8 %v1603
        %v1605 = vlaneseq
        %v1606 = vshrl.u32 %v1605, 7
        %v1607 = vsub.s32 %v1604, %v1606
        %v1608 = vrot.slane %v1594, %v1607
        %v1609 = vcombine.low %v1544, %v1560
        %v1610 = vcombine.high %v1544, %v1560
        %v1612 = vunpack.c.l.s4 1934713408
        %v1613 = vunpack.c.0.s8 %v1612
        %v1614 = vlaneseq
        %v1615 = vshrl.u32 %v1614, 7
        %v1616 = vsub.s32 %v1613, %v1615
        %v1617 = vrot.slane %v1609, %v1616
        %v1619 = vunpack.c.l.s4 1934713408
        %v1620 = vunpack.c.0.s8 %v1619
        %v1621 = vlaneseq
        %v1622 = vshrl.u32 %v1621, 7
        %v1623 = vsub.s32 %v1620, %v1622
        %v1624 = vrot.slane %v1610, %v1623
        %v1625 = vcombine.low %v1569, %v1601
        %v1626 = vcombine.high %v1569, %v1601
        %v1627 = vcombine.low %v1576, %v1608
        %v1628 = vcombine.high %v1576, %v1608
        %v1629 = vcombine.low %v1585, %v1617
        %v1630 = vcombine.high %v1585, %v1617
        %v1631 = vcombine.low %v1592, %v1624
        %v1632 = vcombine.high %v1592, %v1624
        %v1633 = vcombine.low %v961, %v965
        %v1634 = vcombine.high %v961, %v965
        %v1636 = vunpack.c.l.s4 1983009808
        %v1637 = vunpack.c.0.s8 %v1636
        %v1638 = vlaneseq
        %v1639 = vshrl.u32 %v1638, 7
        %v1640 = vsub.s32 %v1637, %v1639
        %v1641 = vrot.slane %v1633, %v1640
        %v1643 = vunpack.c.l.s4 1983009808
        %v1644 = vunpack.c.0.s8 %v1643
        %v1645 = vlaneseq
        %v1646 = vshrl.u32 %v1645, 7
        %v1647 = vsub.s32 %v1644, %v1646
        %v1648 = vrot.slane %v1634, %v1647
        %v1649 = vcombine.low %v963, %v967
        %v1650 = vcombine.high %v963, %v967
        %v1652 = vunpack.c.l.s4 1983009808
        %v1653 = vunpack.c.0.s8 %v1652
        %v1654 = vlaneseq
        %v1655 = vshrl.u32 %v1654, 7
        %v1656 = vsub.s32 %v1653, %v1655
        %v1657 = vrot.slane %v1649, %v1656
        %v1659 = vunpack.c.l.s4 1983009808
        %v1660 = vunpack.c.0.s8 %v1659
        %v1661 = vlaneseq
        %v1662 = vshrl.u32 %v1661, 7
        %v1663 = vsub.s32 %v1660, %v1662
        %v1664 = vrot.slane %v1650, %v1663
        %v1665 = vcombine.low %v969, %v973
        %v1666 = vcombine.high %v969, %v973
        %v1668 = vunpack.c.l.s4 1983009808
        %v1669 = vunpack.c.0.s8 %v1668
        %v1670 = vlaneseq
        %v1671 = vshrl.u32 %v1670, 7
        %v1672 = vsub.s32 %v1669, %v1671
        %v1673 = vrot.slane %v1665, %v1672
        %v1675 = vunpack.c.l.s4 1983009808
        %v1676 = vunpack.c.0.s8 %v1675
        %v1677 = vlaneseq
        %v1678 = vshrl.u32 %v1677, 7
        %v1679 = vsub.s32 %v1676, %v1678
        %v1680 = vrot.slane %v1666, %v1679
        %v1681 = vcombine.low %v971, %v975
        %v1682 = vcombine.high %v971, %v975
        %v1684 = vunpack.c.l.s4 1983009808
        %v1685 = vunpack.c.0.s8 %v1684
        %v1686 = vlaneseq
        %v1687 = vshrl.u32 %v1686, 7
        %v1688 = vsub.s32 %v1685, %v1687
        %v1689 = vrot.slane %v1681, %v1688
        %v1691 = vunpack.c.l.s4 1983009808
        %v1692 = vunpack.c.0.s8 %v1691
        %v1693 = vlaneseq
        %v1694 = vshrl.u32 %v1693, 7
        %v1695 = vsub.s32 %v1692, %v1694
        %v1696 = vrot.slane %v1682, %v1695
        %v1697 = vcombine.low %v1641, %v1657
        %v1698 = vcombine.high %v1641, %v1657
        %v1700 = vunpack.c.l.s4 1934713408
        %v1701 = vunpack.c.0.s8 %v1700
        %v1702 = vlaneseq
        %v1703 = vshrl.u32 %v1702, 7
        %v1704 = vsub.s32 %v1701, %v1703
        %v1705 = vrot.slane %v1697, %v1704
        %v1707 = vunpack.c.l.s4 1934713408
        %v1708 = vunpack.c.0.s8 %v1707
        %v1709 = vlaneseq
        %v1710 = vshrl.u32 %v1709, 7
        %v1711 = vsub.s32 %v1708, %v1710
        %v1712 = vrot.slane %v1698, %v1711
        %v1713 = vcombine.low %v1648, %v1664
        %v1714 = vcombine.high %v1648, %v1664
        %v1716 = vunpack.c.l.s4 1934713408
        %v1717 = vunpack.c.0.s8 %v1716
        %v1718 = vlaneseq
        %v1719 = vshrl.u32 %v1718, 7
        %v1720 = vsub.s32 %v1717, %v1719
        %v1721 = vrot.slane %v1713, %v1720
        %v1723 = vunpack.c.l.s4 1934713408
        %v1724 = vunpack.c.0.s8 %v1723
        %v1725 = vlaneseq
        %v1726 = vshrl.u32 %v1725, 7
        %v1727 = vsub.s32 %v1724, %v1726
        %v1728 = vrot.slane %v1714, %v1727
        %v1729 = vcombine.low %v1673, %v1689
        %v1730 = vcombine.high %v1673, %v1689
        %v1732 = vunpack.c.l.s4 1934713408
        %v1733 = vunpack.c.0.s8 %v1732
        %v1734 = vlaneseq
        %v1735 = vshrl.u32 %v1734, 7
        %v1736 = vsub.s32 %v1733, %v1735
        %v1737 = vrot.slane %v1729, %v1736
        %v1739 = vunpack.c.l.s4 1934713408
        %v1740 = vunpack.c.0.s8 %v1739
        %v1741 = vlaneseq
        %v1742 = vshrl.u32 %v1741, 7
        %v1743 = vsub.s32 %v1740, %v1742
        %v1744 = vrot.slane %v1730, %v1743
        %v1745 = vcombine.low %v1680, %v1696
        %v1746 = vcombine.high %v1680, %v1696
        %v1748 = vunpack.c.l.s4 1934713408
        %v1749 = vunpack.c.0.s8 %v1748
        %v1750 = vlaneseq
        %v1751 = vshrl.u32 %v1750, 7
        %v1752 = vsub.s32 %v1749, %v1751
        %v1753 = vrot.slane %v1745, %v1752
        %v1755 = vunpack.c.l.s4 1934713408
        %v1756 = vunpack.c.0.s8 %v1755
        %v1757 = vlaneseq
        %v1758 = vshrl.u32 %v1757, 7
        %v1759 = vsub.s32 %v1756, %v1758
        %v1760 = vrot.slane %v1746, %v1759
        %v1761 = vcombine.low %v1705, %v1737
        %v1762 = vcombine.high %v1705, %v1737
        %v1763 = vcombine.low %v1712, %v1744
        %v1764 = vcombine.high %v1712, %v1744
        %v1765 = vcombine.low %v1721, %v1753
        %v1766 = vcombine.high %v1721, %v1753
        %v1767 = vcombine.low %v1728, %v1760
        %v1768 = vcombine.high %v1728, %v1760
        %v1769 = vcombine.low %v985, %v989
        %v1770 = vcombine.high %v985, %v989
        %v1772 = vunpack.c.l.s4 1983009808
        %v1773 = vunpack.c.0.s8 %v1772
        %v1774 = vlaneseq
        %v1775 = vshrl.u32 %v1774, 7
        %v1776 = vsub.s32 %v1773, %v1775
        %v1777 = vrot.slane %v1769, %v1776
        %v1779 = vunpack.c.l.s4 1983009808
        %v1780 = vunpack.c.0.s8 %v1779
        %v1781 = vlaneseq
        %v1782 = vshrl.u32 %v1781, 7
        %v1783 = vsub.s32 %v1780, %v1782
        %v1784 = vrot.slane %v1770, %v1783
        %v1785 = vcombine.low %v987, %v991
        %v1786 = vcombine.high %v987, %v991
        %v1788 = vunpack.c.l.s4 1983009808
        %v1789 = vunpack.c.0.s8 %v1788
        %v1790 = vlaneseq
        %v1791 = vshrl.u32 %v1790, 7
        %v1792 = vsub.s32 %v1789, %v1791
        %v1793 = vrot.slane %v1785, %v1792
        %v1795 = vunpack.c.l.s4 1983009808
        %v1796 = vunpack.c.0.s8 %v1795
        %v1797 = vlaneseq
        %v1798 = vshrl.u32 %v1797, 7
        %v1799 = vsub.s32 %v1796, %v1798
        %v1800 = vrot.slane %v1786, %v1799
        %v1801 = vcombine.low %v993, %v997
        %v1802 = vcombine.high %v993, %v997
        %v1804 = vunpack.c.l.s4 1983009808
        %v1805 = vunpack.c.0.s8 %v1804
        %v1806 = vlaneseq
        %v1807 = vshrl.u32 %v1806, 7
        %v1808 = vsub.s32 %v1805, %v1807
        %v1809 = vrot.slane %v1801, %v1808
        %v1811 = vunpack.c.l.s4 1983009808
        %v1812 = vunpack.c.0.s8 %v1811
        %v1813 = vlaneseq
        %v1814 = vshrl.u32 %v1813, 7
        %v1815 = vsub.s32 %v1812, %v1814
        %v1816 = vrot.slane %v1802, %v1815
        %v1817 = vcombine.low %v995, %v999
        %v1818 = vcombine.high %v995, %v999
        %v1820 = vunpack.c.l.s4 1983009808
        %v1821 = vunpack.c.0.s8 %v1820
        %v1822 = vlaneseq
        %v1823 = vshrl.u32 %v1822, 7
        %v1824 = vsub.s32 %v1821, %v1823
        %v1825 = vrot.slane %v1817, %v1824
        %v1827 = vunpack.c.l.s4 1983009808
        %v1828 = vunpack.c.0.s8 %v1827
        %v1829 = vlaneseq
        %v1830 = vshrl.u32 %v1829, 7
        %v1831 = vsub.s32 %v1828, %v1830
        %v1832 = vrot.slane %v1818, %v1831
        %v1833 = vcombine.low %v1777, %v1793
        %v1834 = vcombine.high %v1777, %v1793
        %v1836 = vunpack.c.l.s4 1934713408
        %v1837 = vunpack.c.0.s8 %v1836
        %v1838 = vlaneseq
        %v1839 = vshrl.u32 %v1838, 7
        %v1840 = vsub.s32 %v1837, %v1839
        %v1841 = vrot.slane %v1833, %v1840
        %v1843 = vunpack.c.l.s4 1934713408
        %v1844 = vunpack.c.0.s8 %v1843
        %v1845 = vlaneseq
        %v1846 = vshrl.u32 %v1845, 7
        %v1847 = vsub.s32 %v1844, %v1846
        %v1848 = vrot.slane %v1834, %v1847
        %v1849 = vcombine.low %v1784, %v1800
        %v1850 = vcombine.high %v1784, %v1800
        %v1852 = vunpack.c.l.s4 1934713408
        %v1853 = vunpack.c.0.s8 %v1852
        %v1854 = vlaneseq
        %v1855 = vshrl.u32 %v1854, 7
        %v1856 = vsub.s32 %v1853, %v1855
        %v1857 = vrot.slane %v1849, %v1856
        %v1859 = vunpack.c.l.s4 1934713408
        %v1860 = vunpack.c.0.s8 %v1859
        %v1861 = vlaneseq
        %v1862 = vshrl.u32 %v1861, 7
        %v1863 = vsub.s32 %v1860, %v1862
        %v1864 = vrot.slane %v1850, %v1863
        %v1865 = vcombine.low %v1809, %v1825
        %v1866 = vcombine.high %v1809, %v1825
        %v1868 = vunpack.c.l.s4 1934713408
        %v1869 = vunpack.c.0.s8 %v1868
        %v1870 = vlaneseq
        %v1871 = vshrl.u32 %v1870, 7
        %v1872 = vsub.s32 %v1869, %v1871
        %v1873 = vrot.slane %v1865, %v1872
        %v1875 = vunpack.c.l.s4 1934713408
        %v1876 = vunpack.c.0.s8 %v1875
        %v1877 = vlaneseq
        %v1878 = vshrl.u32 %v1877, 7
        %v1879 = vsub.s32 %v1876, %v1878
        %v1880 = vrot.slane %v1866, %v1879
        %v1881 = vcombine.low %v1816, %v1832
        %v1882 = vcombine.high %v1816, %v1832
        %v1884 = vunpack.c.l.s4 1934713408
        %v1885 = vunpack.c.0.s8 %v1884
        %v1886 = vlaneseq
        %v1887 = vshrl.u32 %v1886, 7
        %v1888 = vsub.s32 %v1885, %v1887
        %v1889 = vrot.slane %v1881, %v1888
        %v1891 = vunpack.c.l.s4 1934713408
        %v1892 = vunpack.c.0.s8 %v1891
        %v1893 = vlaneseq
        %v1894 = vshrl.u32 %v1893, 7
        %v1895 = vsub.s32 %v1892, %v1894
        %v1896 = vrot.slane %v1882, %v1895
        %v1897 = vcombine.low %v1841, %v1873
        %v1898 = vcombine.high %v1841, %v1873
        %v1899 = vcombine.low %v1848, %v1880
        %v1900 = vcombine.high %v1848, %v1880
        %v1901 = vcombine.low %v1857, %v1889
        %v1902 = vcombine.high %v1857, %v1889
        %v1903 = vcombine.low %v1864, %v1896
        %v1904 = vcombine.high %v1864, %v1896
        %v1905 = vcombine.low %v1011, %v1017
        %v1906 = vcombine.high %v1011, %v1017
        %v1908 = vunpack.c.l.s4 1983009808
        %v1909 = vunpack.c.0.s8 %v1908
        %v1910 = vlaneseq
        %v1911 = vshrl.u32 %v1910, 7
        %v1912 = vsub.s32 %v1909, %v1911
        %v1913 = vrot.slane %v1905, %v1912
        %v1915 = vunpack.c.l.s4 1983009808
        %v1916 = vunpack.c.0.s8 %v1915
        %v1917 = vlaneseq
        %v1918 = vshrl.u32 %v1917, 7
        %v1919 = vsub.s32 %v1916, %v1918
        %v1920 = vrot.slane %v1906, %v1919
        %v1921 = vcombine.low %v1014, %v1020
        %v1922 = vcombine.high %v1014, %v1020
        %v1924 = vunpack.c.l.s4 1983009808
        %v1925 = vunpack.c.0.s8 %v1924
        %v1926 = vlaneseq
        %v1927 = vshrl.u32 %v1926, 7
        %v1928 = vsub.s32 %v1925, %v1927
        %v1929 = vrot.slane %v1921, %v1928
        %v1931 = vunpack.c.l.s4 1983009808
        %v1932 = vunpack.c.0.s8 %v1931
        %v1933 = vlaneseq
        %v1934 = vshrl.u32 %v1933, 7
        %v1935 = vsub.s32 %v1932, %v1934
        %v1936 = vrot.slane %v1922, %v1935
        %v1937 = vcombine.low %v1023, %v1029
        %v1938 = vcombine.high %v1023, %v1029
        %v1940 = vunpack.c.l.s4 1983009808
        %v1941 = vunpack.c.0.s8 %v1940
        %v1942 = vlaneseq
        %v1943 = vshrl.u32 %v1942, 7
        %v1944 = vsub.s32 %v1941, %v1943
        %v1945 = vrot.slane %v1937, %v1944
        %v1947 = vunpack.c.l.s4 1983009808
        %v1948 = vunpack.c.0.s8 %v1947
        %v1949 = vlaneseq
        %v1950 = vshrl.u32 %v1949, 7
        %v1951 = vsub.s32 %v1948, %v1950
        %v1952 = vrot.slane %v1938, %v1951
        %v1953 = vcombine.low %v1026, %v1032
        %v1954 = vcombine.high %v1026, %v1032
        %v1956 = vunpack.c.l.s4 1983009808
        %v1957 = vunpack.c.0.s8 %v1956
        %v1958 = vlaneseq
        %v1959 = vshrl.u32 %v1958, 7
        %v1960 = vsub.s32 %v1957, %v1959
        %v1961 = vrot.slane %v1953, %v1960
        %v1963 = vunpack.c.l.s4 1983009808
        %v1964 = vunpack.c.0.s8 %v1963
        %v1965 = vlaneseq
        %v1966 = vshrl.u32 %v1965, 7
        %v1967 = vsub.s32 %v1964, %v1966
        %v1968 = vrot.slane %v1954, %v1967
        %v1969 = vcombine.low %v1913, %v1929
        %v1970 = vcombine.high %v1913, %v1929
        %v1972 = vunpack.c.l.s4 1934713408
        %v1973 = vunpack.c.0.s8 %v1972
        %v1974 = vlaneseq
        %v1975 = vshrl.u32 %v1974, 7
        %v1976 = vsub.s32 %v1973, %v1975
        %v1977 = vrot.slane %v1969, %v1976
        %v1979 = vunpack.c.l.s4 1934713408
        %v1980 = vunpack.c.0.s8 %v1979
        %v1981 = vlaneseq
        %v1982 = vshrl.u32 %v1981, 7
        %v1983 = vsub.s32 %v1980, %v1982
        %v1984 = vrot.slane %v1970, %v1983
        %v1985 = vcombine.low %v1920, %v1936
        %v1986 = vcombine.high %v1920, %v1936
        %v1988 = vunpack.c.l.s4 1934713408
        %v1989 = vunpack.c.0.s8 %v1988
        %v1990 = vlaneseq
        %v1991 = vshrl.u32 %v1990, 7
        %v1992 = vsub.s32 %v1989, %v1991
        %v1993 = vrot.slane %v1985, %v1992
        %v1995 = vunpack.c.l.s4 1934713408
        %v1996 = vunpack.c.0.s8 %v1995
        %v1997 = vlaneseq
        %v1998 = vshrl.u32 %v1997, 7
        %v1999 = vsub.s32 %v1996, %v1998
        %v2000 = vrot.slane %v1986, %v1999
        %v2001 = vcombine.low %v1945, %v1961
        %v2002 = vcombine.high %v1945, %v1961
        %v2004 = vunpack.c.l.s4 1934713408
        %v2005 = vunpack.c.0.s8 %v2004
        %v2006 = vlaneseq
        %v2007 = vshrl.u32 %v2006, 7
        %v2008 = vsub.s32 %v2005, %v2007
        %v2009 = vrot.slane %v2001, %v2008
        %v2011 = vunpack.c.l.s4 1934713408
        %v2012 = vunpack.c.0.s8 %v2011
        %v2013 = vlaneseq
        %v2014 = vshrl.u32 %v2013, 7
        %v2015 = vsub.s32 %v2012, %v2014
        %v2016 = vrot.slane %v2002, %v2015
        %v2017 = vcombine.low %v1952, %v1968
        %v2018 = vcombine.high %v1952, %v1968
        %v2020 = vunpack.c.l.s4 1934713408
        %v2021 = vunpack.c.0.s8 %v2020
        %v2022 = vlaneseq
        %v2023 = vshrl.u32 %v2022, 7
        %v2024 = vsub.s32 %v2021, %v2023
        %v2025 = vrot.slane %v2017, %v2024
        %v2027 = vunpack.c.l.s4 1934713408
        %v2028 = vunpack.c.0.s8 %v2027
        %v2029 = vlaneseq
        %v2030 = vshrl.u32 %v2029, 7
        %v2031 = vsub.s32 %v2028, %v2030
        %v2032 = vrot.slane %v2018, %v2031
        %v2033 = vcombine.low %v1977, %v2009
        %v2034 = vcombine.high %v1977, %v2009
        %v2035 = vcombine.low %v1984, %v2016
        %v2036 = vcombine.high %v1984, %v2016
        %v2037 = vcombine.low %v1993, %v2025
        %v2038 = vcombine.high %v1993, %v2025
        %v2039 = vcombine.low %v2000, %v2032
        %v2040 = vcombine.high %v2000, %v2032
        %v2041 = vcombine.low %v1042, %v1046
        %v2042 = vcombine.high %v1042, %v1046
        %v2044 = vunpack.c.l.s4 1983009808
        %v2045 = vunpack.c.0.s8 %v2044
        %v2046 = vlaneseq
        %v2047 = vshrl.u32 %v2046, 7
        %v2048 = vsub.s32 %v2045, %v2047
        %v2049 = vrot.slane %v2041, %v2048
        %v2051 = vunpack.c.l.s4 1983009808
        %v2052 = vunpack.c.0.s8 %v2051
        %v2053 = vlaneseq
        %v2054 = vshrl.u32 %v2053, 7
        %v2055 = vsub.s32 %v2052, %v2054
        %v2056 = vrot.slane %v2042, %v2055
        %v2057 = vcombine.low %v1044, %v1048
        %v2058 = vcombine.high %v1044, %v1048
        %v2060 = vunpack.c.l.s4 1983009808
        %v2061 = vunpack.c.0.s8 %v2060
        %v2062 = vlaneseq
        %v2063 = vshrl.u32 %v2062, 7
        %v2064 = vsub.s32 %v2061, %v2063
        %v2065 = vrot.slane %v2057, %v2064
        %v2067 = vunpack.c.l.s4 1983009808
        %v2068 = vunpack.c.0.s8 %v2067
        %v2069 = vlaneseq
        %v2070 = vshrl.u32 %v2069, 7
        %v2071 = vsub.s32 %v2068, %v2070
        %v2072 = vrot.slane %v2058, %v2071
        %v2073 = vcombine.low %v1050, %v1054
        %v2074 = vcombine.high %v1050, %v1054
        %v2076 = vunpack.c.l.s4 1983009808
        %v2077 = vunpack.c.0.s8 %v2076
        %v2078 = vlaneseq
        %v2079 = vshrl.u32 %v2078, 7
        %v2080 = vsub.s32 %v2077, %v2079
        %v2081 = vrot.slane %v2073, %v2080
        %v2083 = vunpack.c.l.s4 1983009808
        %v2084 = vunpack.c.0.s8 %v2083
        %v2085 = vlaneseq
        %v2086 = vshrl.u32 %v2085, 7
        %v2087 = vsub.s32 %v2084, %v2086
        %v2088 = vrot.slane %v2074, %v2087
        %v2089 = vcombine.low %v1052, %v1056
        %v2090 = vcombine.high %v1052, %v1056
        %v2092 = vunpack.c.l.s4 1983009808
        %v2093 = vunpack.c.0.s8 %v2092
        %v2094 = vlaneseq
        %v2095 = vshrl.u32 %v2094, 7
        %v2096 = vsub.s32 %v2093, %v2095
        %v2097 = vrot.slane %v2089, %v2096
        %v2099 = vunpack.c.l.s4 1983009808
        %v2100 = vunpack.c.0.s8 %v2099
        %v2101 = vlaneseq
        %v2102 = vshrl.u32 %v2101, 7
        %v2103 = vsub.s32 %v2100, %v2102
        %v2104 = vrot.slane %v2090, %v2103
        %v2105 = vcombine.low %v2049, %v2065
        %v2106 = vcombine.high %v2049, %v2065
        %v2108 = vunpack.c.l.s4 1934713408
        %v2109 = vunpack.c.0.s8 %v2108
        %v2110 = vlaneseq
        %v2111 = vshrl.u32 %v2110, 7
        %v2112 = vsub.s32 %v2109, %v2111
        %v2113 = vrot.slane %v2105, %v2112
        %v2115 = vunpack.c.l.s4 1934713408
        %v2116 = vunpack.c.0.s8 %v2115
        %v2117 = vlaneseq
        %v2118 = vshrl.u32 %v2117, 7
        %v2119 = vsub.s32 %v2116, %v2118
        %v2120 = vrot.slane %v2106, %v2119
        %v2121 = vcombine.low %v2056, %v2072
        %v2122 = vcombine.high %v2056, %v2072
        %v2124 = vunpack.c.l.s4 1934713408
        %v2125 = vunpack.c.0.s8 %v2124
        %v2126 = vlaneseq
        %v2127 = vshrl.u32 %v2126, 7
        %v2128 = vsub.s32 %v2125, %v2127
        %v2129 = vrot.slane %v2121, %v2128
        %v2131 = vunpack.c.l.s4 1934713408
        %v2132 = vunpack.c.0.s8 %v2131
        %v2133 = vlaneseq
        %v2134 = vshrl.u32 %v2133, 7
        %v2135 = vsub.s32 %v2132, %v2134
        %v2136 = vrot.slane %v2122, %v2135
        %v2137 = vcombine.low %v2081, %v2097
        %v2138 = vcombine.high %v2081, %v2097
        %v2140 = vunpack.c.l.s4 1934713408
        %v2141 = vunpack.c.0.s8 %v2140
        %v2142 = vlaneseq
        %v2143 = vshrl.u32 %v2142, 7
        %v2144 = vsub.s32 %v2141, %v2143
        %v2145 = vrot.slane %v2137, %v2144
        %v2147 = vunpack.c.l.s4 1934713408
        %v2148 = vunpack.c.0.s8 %v2147
        %v2149 = vlaneseq
        %v2150 = vshrl.u32 %v2149, 7
        %v2151 = vsub.s32 %v2148, %v2150
        %v2152 = vrot.slane %v2138, %v2151
        %v2153 = vcombine.low %v2088, %v2104
        %v2154 = vcombine.high %v2088, %v2104
        %v2156 = vunpack.c.l.s4 1934713408
        %v2157 = vunpack.c.0.s8 %v2156
        %v2158 = vlaneseq
        %v2159 = vshrl.u32 %v2158, 7
        %v2160 = vsub.s32 %v2157, %v2159
        %v2161 = vrot.slane %v2153, %v2160
        %v2163 = vunpack.c.l.s4 1934713408
        %v2164 = vunpack.c.0.s8 %v2163
        %v2165 = vlaneseq
        %v2166 = vshrl.u32 %v2165, 7
        %v2167 = vsub.s32 %v2164, %v2166
        %v2168 = vrot.slane %v2154, %v2167
        %v2169 = vcombine.low %v2113, %v2145
        %v2170 = vcombine.high %v2113, %v2145
        %v2171 = vcombine.low %v2120, %v2152
        %v2172 = vcombine.high %v2120, %v2152
        %v2173 = vcombine.low %v2129, %v2161
        %v2174 = vcombine.high %v2129, %v2161
        %v2175 = vcombine.low %v2136, %v2168
        %v2176 = vcombine.high %v2136, %v2168
        %v2177 = vcombine.low %v1066, %v1070
        %v2178 = vcombine.high %v1066, %v1070
        %v2180 = vunpack.c.l.s4 1983009808
        %v2181 = vunpack.c.0.s8 %v2180
        %v2182 = vlaneseq
        %v2183 = vshrl.u32 %v2182, 7
        %v2184 = vsub.s32 %v2181, %v2183
        %v2185 = vrot.slane %v2177, %v2184
        %v2187 = vunpack.c.l.s4 1983009808
        %v2188 = vunpack.c.0.s8 %v2187
        %v2189 = vlaneseq
        %v2190 = vshrl.u32 %v2189, 7
        %v2191 = vsub.s32 %v2188, %v2190
        %v2192 = vrot.slane %v2178, %v2191
        %v2193 = vcombine.low %v1068, %v1072
        %v2194 = vcombine.high %v1068, %v1072
        %v2196 = vunpack.c.l.s4 1983009808
        %v2197 = vunpack.c.0.s8 %v2196
        %v2198 = vlaneseq
        %v2199 = vshrl.u32 %v2198, 7
        %v2200 = vsub.s32 %v2197, %v2199
        %v2201 = vrot.slane %v2193, %v2200
        %v2203 = vunpack.c.l.s4 1983009808
        %v2204 = vunpack.c.0.s8 %v2203
        %v2205 = vlaneseq
        %v2206 = vshrl.u32 %v2205, 7
        %v2207 = vsub.s32 %v2204, %v2206
        %v2208 = vrot.slane %v2194, %v2207
        %v2209 = vcombine.low %v1074, %v1078
        %v2210 = vcombine.high %v1074, %v1078
        %v2212 = vunpack.c.l.s4 1983009808
        %v2213 = vunpack.c.0.s8 %v2212
        %v2214 = vlaneseq
        %v2215 = vshrl.u32 %v2214, 7
        %v2216 = vsub.s32 %v2213, %v2215
        %v2217 = vrot.slane %v2209, %v2216
        %v2219 = vunpack.c.l.s4 1983009808
        %v2220 = vunpack.c.0.s8 %v2219
        %v2221 = vlaneseq
        %v2222 = vshrl.u32 %v2221, 7
        %v2223 = vsub.s32 %v2220, %v2222
        %v2224 = vrot.slane %v2210, %v2223
        %v2225 = vcombine.low %v1076, %v1080
        %v2226 = vcombine.high %v1076, %v1080
        %v2228 = vunpack.c.l.s4 1983009808
        %v2229 = vunpack.c.0.s8 %v2228
        %v2230 = vlaneseq
        %v2231 = vshrl.u32 %v2230, 7
        %v2232 = vsub.s32 %v2229, %v2231
        %v2233 = vrot.slane %v2225, %v2232
        %v2235 = vunpack.c.l.s4 1983009808
        %v2236 = vunpack.c.0.s8 %v2235
        %v2237 = vlaneseq
        %v2238 = vshrl.u32 %v2237, 7
        %v2239 = vsub.s32 %v2236, %v2238
        %v2240 = vrot.slane %v2226, %v2239
        %v2241 = vcombine.low %v2185, %v2201
        %v2242 = vcombine.high %v2185, %v2201
        %v2244 = vunpack.c.l.s4 1934713408
        %v2245 = vunpack.c.0.s8 %v2244
        %v2246 = vlaneseq
        %v2247 = vshrl.u32 %v2246, 7
        %v2248 = vsub.s32 %v2245, %v2247
        %v2249 = vrot.slane %v2241, %v2248
        %v2251 = vunpack.c.l.s4 1934713408
        %v2252 = vunpack.c.0.s8 %v2251
        %v2253 = vlaneseq
        %v2254 = vshrl.u32 %v2253, 7
        %v2255 = vsub.s32 %v2252, %v2254
        %v2256 = vrot.slane %v2242, %v2255
        %v2257 = vcombine.low %v2192, %v2208
        %v2258 = vcombine.high %v2192, %v2208
        %v2260 = vunpack.c.l.s4 1934713408
        %v2261 = vunpack.c.0.s8 %v2260
        %v2262 = vlaneseq
        %v2263 = vshrl.u32 %v2262, 7
        %v2264 = vsub.s32 %v2261, %v2263
        %v2265 = vrot.slane %v2257, %v2264
        %v2267 = vunpack.c.l.s4 1934713408
        %v2268 = vunpack.c.0.s8 %v2267
        %v2269 = vlaneseq
        %v2270 = vshrl.u32 %v2269, 7
        %v2271 = vsub.s32 %v2268, %v2270
        %v2272 = vrot.slane %v2258, %v2271
        %v2273 = vcombine.low %v2217, %v2233
        %v2274 = vcombine.high %v2217, %v2233
        %v2276 = vunpack.c.l.s4 1934713408
        %v2277 = vunpack.c.0.s8 %v2276
        %v2278 = vlaneseq
        %v2279 = vshrl.u32 %v2278, 7
        %v2280 = vsub.s32 %v2277, %v2279
        %v2281 = vrot.slane %v2273, %v2280
        %v2283 = vunpack.c.l.s4 1934713408
        %v2284 = vunpack.c.0.s8 %v2283
        %v2285 = vlaneseq
        %v2286 = vshrl.u32 %v2285, 7
        %v2287 = vsub.s32 %v2284, %v2286
        %v2288 = vrot.slane %v2274, %v2287
        %v2289 = vcombine.low %v2224, %v2240
        %v2290 = vcombine.high %v2224, %v2240
        %v2292 = vunpack.c.l.s4 1934713408
        %v2293 = vunpack.c.0.s8 %v2292
        %v2294 = vlaneseq
        %v2295 = vshrl.u32 %v2294, 7
        %v2296 = vsub.s32 %v2293, %v2295
        %v2297 = vrot.slane %v2289, %v2296
        %v2299 = vunpack.c.l.s4 1934713408
        %v2300 = vunpack.c.0.s8 %v2299
        %v2301 = vlaneseq
        %v2302 = vshrl.u32 %v2301, 7
        %v2303 = vsub.s32 %v2300, %v2302
        %v2304 = vrot.slane %v2290, %v2303
        %v2305 = vcombine.low %v2249, %v2281
        %v2306 = vcombine.high %v2249, %v2281
        %v2307 = vcombine.low %v2256, %v2288
        %v2308 = vcombine.high %v2256, %v2288
        %v2309 = vcombine.low %v2265, %v2297
        %v2310 = vcombine.high %v2265, %v2297
        %v2311 = vcombine.low %v2272, %v2304
        %v2312 = vcombine.high %v2272, %v2304
        %2322 = vrot.lane.b32.xlu0 %v1218, 16
        %v2323 = vpop.permute.xlu0 %2322
        %2324 = vrot.lane.b32.xlu0 %v1354, 16
        %v2325 = vpop.permute.xlu0 %2324
        %2326 = vrot.lane.b32.xlu0 %v1490, 16
        %v2327 = vpop.permute.xlu0 %2326
        %2328 = vrot.lane.b32.xlu0 %v1626, 16
        %v2329 = vpop.permute.xlu0 %2328
        %2330 = vrot.lane.b32.xlu0 %v1762, 16
        %v2331 = vpop.permute.xlu0 %2330
        %2332 = vrot.lane.b32.xlu0 %v1898, 16
        %v2333 = vpop.permute.xlu0 %2332
        %2334 = vrot.lane.b32.xlu0 %v2034, 16
        %v2335 = vpop.permute.xlu0 %2334
        %2336 = vrot.lane.b32.xlu0 %v2170, 16
        %v2337 = vpop.permute.xlu0 %2336
        %2338 = vrot.lane.b32.xlu0 %v2306, 16
        %v2339 = vpop.permute.xlu0 %2338
        %2358 = vrot.lane.b32.xlu0 %v1219, 32
        %v2359 = vpop.permute.xlu0 %2358
        %2360 = vrot.lane.b32.xlu0 %v1355, 32
        %v2361 = vpop.permute.xlu0 %2360
        %2362 = vrot.lane.b32.xlu0 %v1491, 32
        %v2363 = vpop.permute.xlu0 %2362
        %2364 = vrot.lane.b32.xlu0 %v1627, 32
        %v2365 = vpop.permute.xlu0 %2364
        %2366 = vrot.lane.b32.xlu0 %v1763, 32
        %v2367 = vpop.permute.xlu0 %2366
        %2368 = vrot.lane.b32.xlu0 %v1899, 32
        %v2369 = vpop.permute.xlu0 %2368
        %2370 = vrot.lane.b32.xlu0 %v2035, 32
        %v2371 = vpop.permute.xlu0 %2370
        %2372 = vrot.lane.b32.xlu0 %v2171, 32
        %v2373 = vpop.permute.xlu0 %2372
        %2374 = vrot.lane.b32.xlu0 %v2307, 32
        %v2375 = vpop.permute.xlu0 %2374
        %2394 = vrot.lane.b32.xlu0 %v1220, 48
        %v2395 = vpop.permute.xlu0 %2394
        %2396 = vrot.lane.b32.xlu0 %v1356, 48
        %v2397 = vpop.permute.xlu0 %2396
        %2398 = vrot.lane.b32.xlu0 %v1492, 48
        %v2399 = vpop.permute.xlu0 %2398
        %2400 = vrot.lane.b32.xlu0 %v1628, 48
        %v2401 = vpop.permute.xlu0 %2400
        %2402 = vrot.lane.b32.xlu0 %v1764, 48
        %v2403 = vpop.permute.xlu0 %2402
        %2404 = vrot.lane.b32.xlu0 %v1900, 48
        %v2405 = vpop.permute.xlu0 %2404
        %2406 = vrot.lane.b32.xlu0 %v2036, 48
        %v2407 = vpop.permute.xlu0 %2406
        %2408 = vrot.lane.b32.xlu0 %v2172, 48
        %v2409 = vpop.permute.xlu0 %2408
        %2410 = vrot.lane.b32.xlu0 %v2308, 48
        %v2411 = vpop.permute.xlu0 %2410
        %2430 = vrot.lane.b32.xlu0 %v1221, 64
        %v2431 = vpop.permute.xlu0 %2430
        %2432 = vrot.lane.b32.xlu0 %v1357, 64
        %v2433 = vpop.permute.xlu0 %2432
        %2434 = vrot.lane.b32.xlu0 %v1493, 64
        %v2435 = vpop.permute.xlu0 %2434
        %2436 = vrot.lane.b32.xlu0 %v1629, 64
        %v2437 = vpop.permute.xlu0 %2436
        %2438 = vrot.lane.b32.xlu0 %v1765, 64
        %v2439 = vpop.permute.xlu0 %2438
        %2440 = vrot.lane.b32.xlu0 %v1901, 64
        %v2441 = vpop.permute.xlu0 %2440
        %2442 = vrot.lane.b32.xlu0 %v2037, 64
        %v2443 = vpop.permute.xlu0 %2442
        %2444 = vrot.lane.b32.xlu0 %v2173, 64
        %v2445 = vpop.permute.xlu0 %2444
        %2446 = vrot.lane.b32.xlu0 %v2309, 64
        %v2447 = vpop.permute.xlu0 %2446
        %2466 = vrot.lane.b32.xlu0 %v1222, 80
        %v2467 = vpop.permute.xlu0 %2466
        %2468 = vrot.lane.b32.xlu0 %v1358, 80
        %v2469 = vpop.permute.xlu0 %2468
        %2470 = vrot.lane.b32.xlu0 %v1494, 80
        %v2471 = vpop.permute.xlu0 %2470
        %2472 = vrot.lane.b32.xlu0 %v1630, 80
        %v2473 = vpop.permute.xlu0 %2472
        %2474 = vrot.lane.b32.xlu0 %v1766, 80
        %v2475 = vpop.permute.xlu0 %2474
        %2476 = vrot.lane.b32.xlu0 %v1902, 80
        %v2477 = vpop.permute.xlu0 %2476
        %2478 = vrot.lane.b32.xlu0 %v2038, 80
        %v2479 = vpop.permute.xlu0 %2478
        %2480 = vrot.lane.b32.xlu0 %v2174, 80
        %v2481 = vpop.permute.xlu0 %2480
        %2482 = vrot.lane.b32.xlu0 %v2310, 80
        %v2483 = vpop.permute.xlu0 %2482
        %2502 = vrot.lane.b32.xlu0 %v1223, 96
        %v2503 = vpop.permute.xlu0 %2502
        %2504 = vrot.lane.b32.xlu0 %v1359, 96
        %v2505 = vpop.permute.xlu0 %2504
        %2506 = vrot.lane.b32.xlu0 %v1495, 96
        %v2507 = vpop.permute.xlu0 %2506
        %2508 = vrot.lane.b32.xlu0 %v1631, 96
        %v2509 = vpop.permute.xlu0 %2508
        %2510 = vrot.lane.b32.xlu0 %v1767, 96
        %v2511 = vpop.permute.xlu0 %2510
        %2512 = vrot.lane.b32.xlu0 %v1903, 96
        %v2513 = vpop.permute.xlu0 %2512
        %2514 = vrot.lane.b32.xlu0 %v2039, 96
        %v2515 = vpop.permute.xlu0 %2514
        %2516 = vrot.lane.b32.xlu0 %v2175, 96
        %v2517 = vpop.permute.xlu0 %2516
        %2518 = vrot.lane.b32.xlu0 %v2311, 96
        %v2519 = vpop.permute.xlu0 %2518
        %2538 = vrot.lane.b32.xlu0 %v1224, 112
        %v2539 = vpop.permute.xlu0 %2538
        %2540 = vrot.lane.b32.xlu0 %v1360, 112
        %v2541 = vpop.permute.xlu0 %2540
        %2542 = vrot.lane.b32.xlu0 %v1496, 112
        %v2543 = vpop.permute.xlu0 %2542
        %2544 = vrot.lane.b32.xlu0 %v1632, 112
        %v2545 = vpop.permute.xlu0 %2544
        %2546 = vrot.lane.b32.xlu0 %v1768, 112
        %v2547 = vpop.permute.xlu0 %2546
        %2548 = vrot.lane.b32.xlu0 %v1904, 112
        %v2549 = vpop.permute.xlu0 %2548
        %2550 = vrot.lane.b32.xlu0 %v2040, 112
        %v2551 = vpop.permute.xlu0 %2550
        %2552 = vrot.lane.b32.xlu0 %v2176, 112
        %v2553 = vpop.permute.xlu0 %2552
        %2554 = vrot.lane.b32.xlu0 %v2312, 112
        %v2555 = vpop.permute.xlu0 %2554
        %v2565 = vsel %vm489, %v1217, %v2323
        %v2566 = vsel %vm489, %v1353, %v2325
        %v2567 = vsel %vm489, %v1489, %v2327
        %v2568 = vsel %vm489, %v1625, %v2329
        %v2569 = vsel %vm489, %v1761, %v2331
        %v2570 = vsel %vm489, %v1897, %v2333
        %v2571 = vsel %vm489, %v2033, %v2335
        %v2572 = vsel %vm489, %v2169, %v2337
        %v2573 = vsel %vm489, %v2305, %v2339
        %vm2574 = vcmask 261120
        %v2575 = vsel %vm2574, %v2565, %v2359
        %v2576 = vsel %vm2574, %v2566, %v2361
        %v2577 = vsel %vm2574, %v2567, %v2363
        %v2578 = vsel %vm2574, %v2568, %v2365
        %v2579 = vsel %vm2574, %v2569, %v2367
        %v2580 = vsel %vm2574, %v2570, %v2369
        %v2581 = vsel %vm2574, %v2571, %v2371
        %v2582 = vsel %vm2574, %v2572, %v2373
        %v2583 = vsel %vm2574, %v2573, %v2375
        %vm2584 = vcmask 392192
        %v2585 = vsel %vm2584, %v2575, %v2395
        %v2586 = vsel %vm2584, %v2576, %v2397
        %v2587 = vsel %vm2584, %v2577, %v2399
        %v2588 = vsel %vm2584, %v2578, %v2401
        %v2589 = vsel %vm2584, %v2579, %v2403
        %v2590 = vsel %vm2584, %v2580, %v2405
        %v2591 = vsel %vm2584, %v2581, %v2407
        %v2592 = vsel %vm2584, %v2582, %v2409
        %v2593 = vsel %vm2584, %v2583, %v2411
        %vm2594 = vcmask 523264
        %v2595 = vsel %vm2594, %v2585, %v2431
        %v2596 = vsel %vm2594, %v2586, %v2433
        %v2597 = vsel %vm2594, %v2587, %v2435
        %v2598 = vsel %vm2594, %v2588, %v2437
        %v2599 = vsel %vm2594, %v2589, %v2439
        %v2600 = vsel %vm2594, %v2590, %v2441
        %v2601 = vsel %vm2594, %v2591, %v2443
        %v2602 = vsel %vm2594, %v2592, %v2445
        %v2603 = vsel %vm2594, %v2593, %v2447
        %vm2604 = vcmask 654336
        %v2605 = vsel %vm2604, %v2595, %v2467
        %v2606 = vsel %vm2604, %v2596, %v2469
        %v2607 = vsel %vm2604, %v2597, %v2471
        %v2608 = vsel %vm2604, %v2598, %v2473
        %v2609 = vsel %vm2604, %v2599, %v2475
        %v2610 = vsel %vm2604, %v2600, %v2477
        %v2611 = vsel %vm2604, %v2601, %v2479
        %v2612 = vsel %vm2604, %v2602, %v2481
        %v2613 = vsel %vm2604, %v2603, %v2483
        %vm2614 = vcmask 785408
        %v2615 = vsel %vm2614, %v2605, %v2503
        %v2616 = vsel %vm2614, %v2606, %v2505
        %v2617 = vsel %vm2614, %v2607, %v2507
        %v2618 = vsel %vm2614, %v2608, %v2509
        %v2619 = vsel %vm2614, %v2609, %v2511
        %v2620 = vsel %vm2614, %v2610, %v2513
        %v2621 = vsel %vm2614, %v2611, %v2515
        %v2622 = vsel %vm2614, %v2612, %v2517
        %v2623 = vsel %vm2614, %v2613, %v2519
        %vm2624 = vcmask 916480
        %v2625 = vsel %vm2624, %v2615, %v2539
        %v2626 = vsel %vm2624, %v2616, %v2541
        %v2627 = vsel %vm2624, %v2617, %v2543
        %v2628 = vsel %vm2624, %v2618, %v2545
        %v2629 = vsel %vm2624, %v2619, %v2547
        %v2630 = vsel %vm2624, %v2620, %v2549
        %v2631 = vsel %vm2624, %v2621, %v2551
        %v2632 = vsel %vm2624, %v2622, %v2553
        %v2633 = vsel %vm2624, %v2623, %v2555
        %v2634 = vld [vmem:[%s3] sm:$0xff]
        %v2635 = vld [vmem:[%s4] sm:$0xff]
        %2637 = vset.pattern.permute.xlu0 0
        %2638 = vperm.xlu0 %2637, %v2635
        %v2639 = vpop.permute.xlu0 %2638
        %v2642 = vsel %vm481, %v2634, 0
        %2644 = vmatprep.subr.mxu0 0.0
        %2645 = vmatpush1.msra.mxu0 0.0
        %2646 = vmatprep.subr.mxu0 0.0
        %2647 = vmatpush1.msra.mxu0 0.0
        %2648 = vmatprep.subr.mxu0 0.0
        %2649 = vmatpush1.msra.mxu0 0.0
        %2650 = vmatprep.subr.mxu0 0.0
        %2651 = vmatpush1.msra.mxu0 0.0
        %2652 = vmatprep.subr.mxu0 0.0
        %2653 = vmatpush1.msra.mxu0 0.0
        %2654 = vmatprep.subr.mxu0 0.0
        %2655 = vmatpush1.msra.mxu0 0.0
        %2656 = vmatprep.subr.mxu0 0.0
        %2657 = vmatpush1.msra.mxu0 0.0
        %2658 = vmatprep.subr.mxu0 0.0
        %2659 = vmatpush1.msra.mxu0 %v2633
        %2660 = vmatprep.subr.mxu0 0.0
        %2661 = vmatpush1.msra.mxu0 %v2632
        %2662 = vmatprep.subr.mxu0 0.0
        %2663 = vmatpush1.msra.mxu0 %v2631
        %2664 = vmatprep.subr.mxu0 0.0
        %2665 = vmatpush1.msra.mxu0 %v2630
        %2666 = vmatprep.subr.mxu0 0.0
        %2667 = vmatpush1.msra.mxu0 %v2629
        %2668 = vmatprep.subr.mxu0 0.0
        %2669 = vmatpush1.msra.mxu0 %v2628
        %2670 = vmatprep.subr.mxu0 0.0
        %2671 = vmatpush1.msra.mxu0 %v2627
        %2672 = vmatprep.subr.mxu0 0.0
        %2673 = vmatpush1.msra.mxu0 %v2626
        %2674 = vmatprep.subr.mxu0 0.0
        %2675 = vmatpush1.msra.mxu0 %v2625
        %2676 = vmatprep.subr.mxu0 0.0
        %2677 = vmatpush2.msra.mxu0 0.0
        %2678 = vmatprep.subr.mxu0 0.0
        %2679 = vmatpush2.msra.mxu0 0.0
        %2680 = vmatprep.subr.mxu0 0.0
        %2681 = vmatpush2.msra.mxu0 0.0
        %2682 = vmatprep.subr.mxu0 0.0
        %2683 = vmatpush2.msra.mxu0 0.0
        %2684 = vmatprep.subr.mxu0 0.0
        %2685 = vmatpush2.msra.mxu0 0.0
        %2686 = vmatprep.subr.mxu0 0.0
        %2687 = vmatpush2.msra.mxu0 0.0
        %2688 = vmatprep.subr.mxu0 0.0
        %2689 = vmatpush2.msra.mxu0 0.0
        %2690 = vmatprep.subr.mxu0 0.0
        %2691 = vmatpush2.msra.mxu0 0.0
        %2692 = vmatprep.subr.mxu0 0.0
        %2693 = vmatpush2.msra.mxu0 0.0
        %2694 = vmatprep.subr.mxu0 0.0
        %2695 = vmatpush2.msra.mxu0 0.0
        %2696 = vmatprep.subr.mxu0 0.0
        %2697 = vmatpush2.msra.mxu0 0.0
        %2698 = vmatprep.subr.mxu0 0.0
        %2699 = vmatpush2.msra.mxu0 0.0
        %2700 = vmatprep.subr.mxu0 0.0
        %2701 = vmatpush2.msra.mxu0 0.0
        %2702 = vmatprep.subr.mxu0 0.0
        %2703 = vmatpush2.msra.mxu0 0.0
        %2704 = vmatprep.subr.mxu0 0.0
        %2705 = vmatpush2.msra.mxu0 0.0
        %2706 = vmatprep.subr.mxu0 0.0
        %2707 = vmatpush2.msra.mxu0 0.0
        %2708 = vmatprep.mubr.f32.mxu0 0.0
        %2709 = vmatmul.mubr.f32.gmra.mxu0 %v2642
        %v2710 = vpop.f32.mrf.mxu0
        %v2711 = vadd.f32 %v2639, %v2710
        %v2712 = vpop.f32.mrf.mxu0
        %2713 = vdwg.mxu0
        %vm2714 = vcmp.ge.f32.partialorder %v2711, 0.0
        %v2715 = vstv %s334
        %v2716 = vmul.f32 %v2715, %v2711
        %v2717 = vsel %vm2714, %v2711, %v2716
        %v2726 = vrot.slane %v337, 1
        %v2727 = vrot.slane %v338, 1
        %v2728 = vsel %vm927, %v2726, %v2727
        %v2729 = vrot.slane %v339, 1
        %v2730 = vrot.slane %v340, 1
        %v2731 = vsel %vm927, %v2729, %v2730
        %v2732 = vrot.slane %v341, 1
        %v2733 = vrot.slane %v342, 1
        %v2734 = vsel %vm927, %v2732, %v2733
        %v2735 = vrot.slane %v343, 1
        %v2736 = vrot.slane %v344, 1
        %v2737 = vsel %vm927, %v2735, %v2736
        %2738 = vrot.lane.b32.xlu0 %v2728, 127
        %v2739 = vpop.permute.xlu0 %2738
        %2740 = vrot.lane.b32.xlu0 %v2731, 127
        %v2741 = vpop.permute.xlu0 %2740
        %2742 = vrot.lane.b32.xlu0 %v2734, 127
        %v2743 = vpop.permute.xlu0 %2742
        %2744 = vrot.lane.b32.xlu0 %v2737, 127
        %v2745 = vpop.permute.xlu0 %2744
        %v2750 = vcombine.low %v2739, %v2743
        %v2751 = vcombine.high %v2739, %v2743
        %v2753 = vunpack.c.l.s4 1983009808
        %v2754 = vunpack.c.0.s8 %v2753
        %v2755 = vlaneseq
        %v2756 = vshrl.u32 %v2755, 7
        %v2757 = vsub.s32 %v2754, %v2756
        %v2758 = vrot.slane %v2750, %v2757
        %v2760 = vunpack.c.l.s4 1983009808
        %v2761 = vunpack.c.0.s8 %v2760
        %v2762 = vlaneseq
        %v2763 = vshrl.u32 %v2762, 7
        %v2764 = vsub.s32 %v2761, %v2763
        %v2765 = vrot.slane %v2751, %v2764
        %v2766 = vcombine.low %v2741, %v2745
        %v2767 = vcombine.high %v2741, %v2745
        %v2769 = vunpack.c.l.s4 1983009808
        %v2770 = vunpack.c.0.s8 %v2769
        %v2771 = vlaneseq
        %v2772 = vshrl.u32 %v2771, 7
        %v2773 = vsub.s32 %v2770, %v2772
        %v2774 = vrot.slane %v2766, %v2773
        %v2776 = vunpack.c.l.s4 1983009808
        %v2777 = vunpack.c.0.s8 %v2776
        %v2778 = vlaneseq
        %v2779 = vshrl.u32 %v2778, 7
        %v2780 = vsub.s32 %v2777, %v2779
        %v2781 = vrot.slane %v2767, %v2780
        %v2782 = vcombine.low %v2758, %v2774
        %v2783 = vcombine.high %v2758, %v2774
        %v2785 = vunpack.c.l.s4 1934713408
        %v2786 = vunpack.c.0.s8 %v2785
        %v2787 = vlaneseq
        %v2788 = vshrl.u32 %v2787, 7
        %v2789 = vsub.s32 %v2786, %v2788
        %v2790 = vrot.slane %v2782, %v2789
        %v2792 = vunpack.c.l.s4 1934713408
        %v2793 = vunpack.c.0.s8 %v2792
        %v2794 = vlaneseq
        %v2795 = vshrl.u32 %v2794, 7
        %v2796 = vsub.s32 %v2793, %v2795
        %v2797 = vrot.slane %v2783, %v2796
        %v2798 = vcombine.low %v2765, %v2781
        %v2799 = vcombine.high %v2765, %v2781
        %v2801 = vunpack.c.l.s4 1934713408
        %v2802 = vunpack.c.0.s8 %v2801
        %v2803 = vlaneseq
        %v2804 = vshrl.u32 %v2803, 7
        %v2805 = vsub.s32 %v2802, %v2804
        %v2806 = vrot.slane %v2798, %v2805
        %v2808 = vunpack.c.l.s4 1934713408
        %v2809 = vunpack.c.0.s8 %v2808
        %v2810 = vlaneseq
        %v2811 = vshrl.u32 %v2810, 7
        %v2812 = vsub.s32 %v2809, %v2811
        %v2813 = vrot.slane %v2799, %v2812
        %v2814 = vcombine.high %v2790, 0.0
        %v2815 = vcombine.high %v2797, 0.0
        %v2816 = vcombine.high %v2806, 0.0
        %v2817 = vcombine.high %v2813, 0.0
        %2819 = vrot.lane.b32.xlu0 %v2814, 16
        %v2820 = vpop.permute.xlu0 %2819
        %2823 = vrot.lane.b32.xlu0 %v2797, 32
        %v2824 = vpop.permute.xlu0 %2823
        %2827 = vrot.lane.b32.xlu0 %v2815, 48
        %v2828 = vpop.permute.xlu0 %2827
        %2831 = vrot.lane.b32.xlu0 %v2806, 64
        %v2832 = vpop.permute.xlu0 %2831
        %2835 = vrot.lane.b32.xlu0 %v2816, 80
        %v2836 = vpop.permute.xlu0 %2835
        %2839 = vrot.lane.b32.xlu0 %v2813, 96
        %v2840 = vpop.permute.xlu0 %2839
        %2843 = vrot.lane.b32.xlu0 %v2817, 112
        %v2844 = vpop.permute.xlu0 %2843
        %v2846 = vsel %vm489, %v2790, %v2820
        %v2847 = vsel %vm2574, %v2846, %v2824
        %v2848 = vsel %vm2584, %v2847, %v2828
        %v2849 = vsel %vm2594, %v2848, %v2832
        %v2850 = vsel %vm2604, %v2849, %v2836
        %v2851 = vsel %vm2614, %v2850, %v2840
        %v2852 = vsel %vm2624, %v2851, %v2844
        %v2853 = vld [vmem:[%s5] sm:$0xff]
        %v2854 = vld [vmem:[%s5 + $0x8] sm:$0xff]
        %v2855 = vld [vmem:[%s6] sm:$0xff]
        %v2856 = vld [vmem:[%s6 + $0x8] sm:$0xff]
        %2858 = vset.pattern.permute.xlu0 0
        %2859 = vperm.xlu0 %2858, %v2855
        %v2860 = vpop.permute.xlu0 %2859
        %2863 = vset.pattern.permute.xlu0 0
        %2864 = vperm.xlu0 %2863, %v2856
        %v2865 = vpop.permute.xlu0 %2864
        %vm2867 = vcmask 97280
        %v2869 = vsel %vm2867, %v2853, 0
        %v2872 = vsel %vm2867, %v2854, 0
        %v2875 = vsel %vm503, %v2852, 0
        %2877 = vmatprep.subr.mxu0 0.0
        %2878 = vmatpush1.msra.mxu0 0.0
        %2879 = vmatprep.subr.mxu0 0.0
        %2880 = vmatpush1.msra.mxu0 0.0
        %2881 = vmatprep.subr.mxu0 0.0
        %2882 = vmatpush1.msra.mxu0 0.0
        %2883 = vmatprep.subr.mxu0 0.0
        %2884 = vmatpush1.msra.mxu0 0.0
        %2885 = vmatprep.subr.mxu0 0.0
        %2886 = vmatpush1.msra.mxu0 0.0
        %2887 = vmatprep.subr.mxu0 0.0
        %2888 = vmatpush1.msra.mxu0 0.0
        %2889 = vmatprep.subr.mxu0 0.0
        %2890 = vmatpush1.msra.mxu0 0.0
        %2891 = vmatprep.subr.mxu0 0.0
        %2892 = vmatpush1.msra.mxu0 0.0
        %2893 = vmatprep.subr.mxu0 0.0
        %2894 = vmatpush1.msra.mxu0 0.0
        %2895 = vmatprep.subr.mxu0 0.0
        %2896 = vmatpush1.msra.mxu0 0.0
        %2897 = vmatprep.subr.mxu0 0.0
        %2898 = vmatpush1.msra.mxu0 0.0
        %2899 = vmatprep.subr.mxu0 0.0
        %2900 = vmatpush1.msra.mxu0 0.0
        %2901 = vmatprep.subr.mxu0 0.0
        %2902 = vmatpush1.msra.mxu0 0.0
        %2903 = vmatprep.subr.mxu0 0.0
        %2904 = vmatpush1.msra.mxu0 0.0
        %2905 = vmatprep.subr.mxu0 0.0
        %2906 = vmatpush1.msra.mxu0 %v2875
        %2907 = vmatprep.subr.mxu0 0.0
        %2908 = vmatpush1.msra.mxu0 %v2717
        %2909 = vmatprep.subr.mxu0 0.0
        %2910 = vmatpush2.msra.mxu0 0.0
        %2911 = vmatprep.subr.mxu0 0.0
        %2912 = vmatpush2.msra.mxu0 0.0
        %2913 = vmatprep.subr.mxu0 0.0
        %2914 = vmatpush2.msra.mxu0 0.0
        %2915 = vmatprep.subr.mxu0 0.0
        %2916 = vmatpush2.msra.mxu0 0.0
        %2917 = vmatprep.subr.mxu0 0.0
        %2918 = vmatpush2.msra.mxu0 0.0
        %2919 = vmatprep.subr.mxu0 0.0
        %2920 = vmatpush2.msra.mxu0 0.0
        %2921 = vmatprep.subr.mxu0 0.0
        %2922 = vmatpush2.msra.mxu0 0.0
        %2923 = vmatprep.subr.mxu0 0.0
        %2924 = vmatpush2.msra.mxu0 0.0
        %2925 = vmatprep.subr.mxu0 0.0
        %2926 = vmatpush2.msra.mxu0 0.0
        %2927 = vmatprep.subr.mxu0 0.0
        %2928 = vmatpush2.msra.mxu0 0.0
        %2929 = vmatprep.subr.mxu0 0.0
        %2930 = vmatpush2.msra.mxu0 0.0
        %2931 = vmatprep.subr.mxu0 0.0
        %2932 = vmatpush2.msra.mxu0 0.0
        %2933 = vmatprep.subr.mxu0 0.0
        %2934 = vmatpush2.msra.mxu0 0.0
        %2935 = vmatprep.subr.mxu0 0.0
        %2936 = vmatpush2.msra.mxu0 0.0
        %2937 = vmatprep.subr.mxu0 0.0
        %2938 = vmatpush2.msra.mxu0 0.0
        %2939 = vmatprep.subr.mxu0 0.0
        %2940 = vmatpush2.msra.mxu0 0.0
        %2941 = vmatprep.mubr.f32.mxu0 0.0
        %2942 = vmatmul.mubr.f32.gmra.mxu0 %v2869
        %v2943 = vpop.f32.mrf.mxu0
        %v2944 = vadd.f32 %v2860, %v2943
        %v2945 = vpop.f32.mrf.mxu0
        %2946 = vmatprep.mubr.f32.mxu0 0.0
        %2947 = vmatmul.mubr.f32.gmra.mxu0 %v2872
        %v2948 = vpop.f32.mrf.mxu0
        %v2949 = vadd.f32 %v2865, %v2948
        %v2950 = vpop.f32.mrf.mxu0
        %2951 = vdwg.mxu0
        %vm2952 = vcmp.ge.f32.partialorder %v2944, 0.0
        %vm2953 = vcmp.ge.f32.partialorder %v2949, 0.0
        %v2954 = vstv %s335
        %v2955 = vmul.f32 %v2954, %v2944
        %v2956 = vmul.f32 %v2954, %v2949
        %v2957 = vsel %vm2952, %v2944, %v2955
        %v2958 = vsel %vm2953, %v2949, %v2956
        %2959 = vst [vmem:[%s326] sm:$0xff] %v2957
        %2960 = vst [vmem:[%s326 + $0x8] sm:$0xff] %v2958
        %s2961 = sand.u32 %s218, 1
        %s2962 = scalar_lea.sflag [#allocation3], %s2961
        %s2963 = sand.u32 %s218, 1
        %s2964 = smul.addr %s2963, 16
        %s2965 = scalar_lea.vmem [#allocation5], %s2964
        // Predicated region
        $region57: #{tpu_custom_call.1} parent=51 // pred_check
          %p2966 = pneg %p228
        $region58: #{tpu_custom_call.1} parent=51 // pred_check_branch
          %2968 = sbr.rel (%p2966) target = $region60
        $region59: #{tpu_custom_call.1} parent=51 // pred_region
          %s2970 = ssub.s32 256, 256
          %2971 = vsyncadd %s2962, %s2970
          %s2972 = smul.addr %s27, 4
          %s2973 = sadd.s32 %s28, %s2972
          %s2974 = smul.addr %s2973, 128
          %s2975 = scalar_lea.hbm %s8, %s2974
          %s2976 = sshll.u32 %s2965, 4
          %s2977 = int_to_ptr.vmem [resolvable:$true] %s2976
          %2982 = dma.vmem_to_hbm [thread:$0]  %s2977, 256, %s2975, %s2962, 128, 256, 8
        $region60: #{tpu_custom_call.1} parent=51 // pred_fallthru
          _
      $region52: #{tpu_custom_call.1} parent=5 // pred_fallthru
        _
      %p2983 = scmp.le.s32.totalorder 2, %s18
      // Predicated region
      $region61: #{tpu_custom_call.1} parent=5 // pred_check
        %p2984 = pneg %p2983
      $region62: #{tpu_custom_call.1} parent=5 // pred_check_branch
        %2986 = sbr.rel (%p2984) target = $region64
      $region63: #{tpu_custom_call.1} parent=5 // pred_region
        %s2987 = ssub.s32 %s18, 2
        // Predicated region
        $region65: #{tpu_custom_call.1} parent=63 // pred_check
          %p2988 = pneg %p234
        $region66: #{tpu_custom_call.1} parent=63 // pred_check_branch
          %2990 = sbr.rel (%p2988) target = $region68
        $region67: #{tpu_custom_call.1} parent=63 // pred_region
          %s2991 = sand.u32 %s219, 1
          %s2992 = scalar_lea.sflag [#allocation3], %s2991
          %s2993 = sand.u32 %s219, 1
          %s2994 = smul.addr %s2993, 16
          %s2995 = scalar_lea.vmem [#allocation5], %s2994
          %2996 = dma.done %s2992, 256
        $region68: #{tpu_custom_call.1} parent=63 // pred_fallthru
          _
      $region64: #{tpu_custom_call.1} parent=5 // pred_fallthru
        _
    $region6: #{tpu_custom_call.1} parent=1 // loop_footer
      %s22 = sadd.s32 1, %s18
    $region7: #{tpu_custom_call.1} parent=1 // loop_footer_branch
      %17 = sbr.rel target = $region3
    $region8: #{tpu_custom_call.1} parent=1 // loop_exit
      _
    %2997 = vsyncpa [#allocation3], 1
    %s2998 = scalar_lea.sflag [#allocation3], 1
    %2999 = vsyncpa %s2998, 1
    %3000 = vsyncpa [#allocation4], 1
    %s3001 = scalar_lea.sflag [#allocation4], 1
    %3002 = vsyncpa %s3001, 1

</llo_original>
